<compile_context>
chip_gen: v7x
topology: tpu7x:2x2x1
jax: 0.10.0
libtpu: 0.0.40
codegen_flags: <defaults>
</compile_context>

<pallas_src>
import functools
import math

import jax
import jax.numpy as jnp
from jax.experimental import pallas as pl
from jax.experimental.pallas import tpu as pltpu


def _round_up(a, b):
    return ((a + b - 1) // b) * b


# --------------------------------------------------------------------------
# Kernel
# --------------------------------------------------------------------------
def _resnet_block_kernel(*refs, has_projection):
    """refs: x[TM,Cin], w0t[Cin,H], b0[1,H], w1t[H,Cp], b1[1,Cp], (wst[Cin,Cp]), o[TM,Cp]."""
    if has_projection:
        x_ref, w0_ref, b0_ref, w1_ref, b1_ref, ws_ref, o_ref = refs
    else:
        x_ref, w0_ref, b0_ref, w1_ref, b1_ref, o_ref = refs
        ws_ref = None

    x = x_ref[...]                                     # [TM, Cin], input dtype

    # fc_0(relu(x)) -> [TM, H], f32 accumulation on the MXU.
    h = jnp.dot(jnp.maximum(x, 0.0).astype(w0_ref.dtype), w0_ref[...],
                preferred_element_type=jnp.float32)
    h = h + b0_ref[...].astype(jnp.float32)

    # fc_1(relu(h)) -> [TM, Cp] (Cp = lane-padded size_out).
    dx = jnp.dot(jnp.maximum(h, 0.0).astype(w1_ref.dtype), w1_ref[...],
                 preferred_element_type=jnp.float32)
    dx = dx + b1_ref[...].astype(jnp.float32)

    # Shortcut: learned projection, exact [I|0] projection (padded identity),
    # or a plain pass-through when no padding is needed.
    if has_projection:
        x_s = jnp.dot(x.astype(ws_ref.dtype), ws_ref[...],
                      preferred_element_type=jnp.float32)
    else:
        x_s = x.astype(jnp.float32)

    o_ref[...] = (x_s + dx).astype(o_ref.dtype)


# --------------------------------------------------------------------------
# Parameter preparation (done ONCE, not per forward call)
# --------------------------------------------------------------------------
def init_resnet_block_fc_params(w0, b0, w1, b1, w_s=None, *, param_dtype=None):
    """Convert PyTorch-layout parameters to the kernel's layout.

    w0 : [size_h, size_in],  b0: [size_h]       (fc_0)
    w1 : [size_out, size_h], b1: [size_out]     (fc_1)
    w_s: [size_out, size_in] or None            (shortcut, no bias)
    param_dtype: optional cast for the matmul weights (e.g. jnp.bfloat16 on
                 v6e/v7x once the layer is compute-bound).
    """
    size_h, size_in = w0.shape
    size_out = w1.shape[0]
    has_shortcut = w_s is not None
    if not has_shortcut:
        assert size_in == size_out, "identity shortcut requires size_in == size_out"

    cout_pad = _round_up(size_out, 128)        # lane-dense output width
    pad = cout_pad - size_out

    def cvt(a):
        return a if param_dtype is None else a.astype(param_dtype)

    w0_t = cvt(jnp.transpose(w0))                          # [Cin, H]
    b0_2d = b0.reshape(1, size_h)

    w1_t = jnp.transpose(w1)                               # [H, Cout]
    b1_2d = b1.reshape(1, size_out)
    if pad:
        w1_t = jnp.pad(w1_t, ((0, 0), (0, pad)))
        b1_2d = jnp.pad(b1_2d, ((0, 0), (0, pad)))
    w1_t = cvt(w1_t)

    if has_shortcut:
        ws_t = jnp.transpose(w_s)                          # [Cin, Cout]
        if pad:
            ws_t = jnp.pad(ws_t, ((0, 0), (0, pad)))
        ws_t = cvt(ws_t)
    elif pad:
        # Identity shortcut but lane-padded output: exact [I | 0] projection.
        ws_t = jnp.eye(size_in, cout_pad, dtype=jnp.float32)
    else:
        ws_t = None

    return dict(w0_t=w0_t, b0=b0_2d, w1_t=w1_t, b1=b1_2d, ws_t=ws_t,
                size_in=size_in, size_h=size_h, size_out=size_out,
                cout_pad=cout_pad)


# --------------------------------------------------------------------------
# Row-tile selection
# --------------------------------------------------------------------------
def _choose_block_rows(M, size_in, size_h, cout_pad, x_itemsize,
                       *, vmem_budget=24 << 20, max_rows=4096):
    """Largest row tile (multiple of 8) fitting the VMEM budget, grid kept >= 2."""
    if M <= 8:
        return M                                  # full extent, single step
    # Rough per-row VMEM bytes: double-buffered x/out streams + f32 temporaries.
    per_row = (2 * size_in * x_itemsize + 2 * cout_pad * x_itemsize
               + 4 * (size_in + size_h + 2 * cout_pad))
    tm = vmem_budget // max(per_row, 1)
    tm = max(8, min(max_rows, int(tm)))
    # Keep at least 2 grid steps so both v7x TensorCores get work; the one
    # extra ~0.35us step on single-TC chips (v5e/v6e) is negligible.
    half = _round_up(pl.cdiv(M, 2), 8)
    tm = min(tm, half)
    tm = (tm // 8) * 8
    return max(tm, 8)


# --------------------------------------------------------------------------
# Forward
# --------------------------------------------------------------------------
def resnet_block_fc(x, params, *, max_block_rows=4096,
                    vmem_budget_bytes=24 << 20):
    """Fused ResnetBlockFC forward.  x: [..., size_in] -> [..., size_out]."""
    *lead, size_in = x.shape
    assert size_in == params["size_in"]
    size_h = params["size_h"]
    size_out = params["size_out"]
    cout_pad = params["cout_pad"]
    w0_t, b0 = params["w0_t"], params["b0"]
    w1_t, b1 = params["w1_t"], params["b1"]
    ws_t = params["ws_t"]
    has_projection = ws_t is not None

    M = int(math.prod(lead)) if lead else 1
    x2 = x.reshape(M, size_in)
    x_item = x.dtype.itemsize

    TM = _choose_block_rows(M, size_in, size_h, cout_pad, x_item,
                            vmem_budget=vmem_budget_bytes,
                            max_rows=max_block_rows)
    grid = (pl.cdiv(M, TM),)

    in_specs = [
        pl.BlockSpec((TM, size_in), lambda i: (i, 0)),        # x tile (pipelined)
        pl.BlockSpec((size_in, size_h), lambda i: (0, 0)),    # w0^T (resident)
        pl.BlockSpec((1, size_h), lambda i: (0, 0)),          # b0
        pl.BlockSpec((size_h, cout_pad), lambda i: (0, 0)),   # w1^T (resident)
        pl.BlockSpec((1, cout_pad), lambda i: (0, 0)),        # b1
    ]
    args = [x2, w0_t, b0, w1_t, b1]
    if has_projection:
        in_specs.append(pl.BlockSpec((size_in, cout_pad), lambda i: (0, 0)))
        args.append(ws_t)

    # VMEM limit sized from the actual tiles (resident weights double-buffered
    # by the pipeline + streamed x/out tiles + f32 temporaries + headroom).
    w_bytes = (w0_t.size * w0_t.dtype.itemsize + b0.size * b0.dtype.itemsize
               + w1_t.size * w1_t.dtype.itemsize + b1.size * b1.dtype.itemsize
               + (ws_t.size * ws_t.dtype.itemsize if has_projection else 0))
    stream_bytes = 2 * TM * (size_in + cout_pad) * x_item
    interm_bytes = 4 * TM * (size_in + size_h + 2 * cout_pad)
    vmem_limit = int(min(64 << 20,
                         max(32 << 20,
                             2 * w_bytes + 2 * (stream_bytes + interm_bytes)
                             + (4 << 20))))

    flops = 2 * M * (size_in * size_h + size_h * cout_pad
                     + (size_in * cout_pad if has_projection else 0))
    bytes_accessed = (M * size_in * x_item + M * cout_pad * x_item + w_bytes)
    cost = pl.CostEstimate(flops=int(flops), transcendentals=0,
                           bytes_accessed=int(bytes_accessed))

    kernel = functools.partial(_resnet_block_kernel,
                               has_projection=has_projection)

    out2 = pl.pallas_call(
        kernel,
        out_shape=jax.ShapeDtypeStruct((M, cout_pad), x.dtype),
        grid=grid,
        in_specs=in_specs,
        out_specs=pl.BlockSpec((TM, cout_pad), lambda i: (i, 0)),
        compiler_params=pltpu.CompilerParams(
            dimension_semantics=("parallel",),
            vmem_limit_bytes=vmem_limit,
        ),
        cost_estimate=cost,
    )(*args)

    if cout_pad != size_out:
        out2 = out2[:, :size_out]          # drop lane padding (fused by XLA)
    return out2.reshape(*lead, size_out)


# --------------------------------------------------------------------------
# Pure-JAX reference (mirrors the PyTorch forward)
# --------------------------------------------------------------------------
def resnet_block_fc_ref(x, w0, b0, w1, b1, w_s=None):
    h = jnp.maximum(x, 0.0) @ w0.T + b0
    dx = jnp.maximum(h, 0.0) @ w1.T + b1
    x_s = x @ w_s.T if w_s is not None else x
    return x_s + dx


if __name__ == "__main__":
    key = jax.random.PRNGKey(0)
    k = jax.random.split(key, 8)

    # Small but grid-exercising shapes: M = B*N = 1024 rows.
    B, N = 2, 512
    size_in, size_h, size_out = 32, 32, 64   # size_in != size_out -> learned shortcut

    x = jax.random.normal(k[0], (B, N, size_in), dtype=jnp.float32)

    def linear_init(kw, kb, out_f, in_f):
        bound = 1.0 / jnp.sqrt(jnp.float32(in_f))
        w = jax.random.uniform(kw, (out_f, in_f), jnp.float32, -bound, bound)
        b = jax.random.uniform(kb, (out_f,), jnp.float32, -bound, bound)
        return w, b

    w0, b0 = linear_init(k[1], k[2], size_h, size_in)
    w1, b1 = linear_init(k[3], k[4], size_out, size_h)   # (zero-init in PyTorch; nonzero
                                                         #  here to exercise the math)
    bound_s = 1.0 / jnp.sqrt(jnp.float32(size_in))
    w_s = jax.random.uniform(k[5], (size_out, size_in), jnp.float32, -bound_s, bound_s)

    # --- learned shortcut (size_in != size_out) ---
    params = init_resnet_block_fc_params(w0, b0, w1, b1, w_s)   # init-time prep
    out = jax.block_until_ready(resnet_block_fc(x, params))
    ref = resnet_block_fc_ref(x, w0, b0, w1, b1, w_s)
    assert out.shape == (B, N, size_out)
    err = float(jnp.max(jnp.abs(out - ref)))
    assert jnp.allclose(out, ref, rtol=2e-3, atol=2e-3), err

    # --- identity shortcut (size_in == size_out) ---
    w1b, b1b = linear_init(k[6], k[7], size_in, size_h)
    params_id = init_resnet_block_fc_params(w0, b0, w1b, b1b, None)
    out2 = jax.block_until_ready(resnet_block_fc(x, params_id))
    ref2 = resnet_block_fc_ref(x, w0, b0, w1b, b1b, None)
    assert out2.shape == (B, N, size_in)
    err2 = float(jnp.max(jnp.abs(out2 - ref2)))
    assert jnp.allclose(out2, ref2, rtol=2e-3, atol=2e-3), err2

    print("KERNEL_OK")
</pallas_src>

<mosaic_0001>
module attributes {stable_mosaic.version = 11 : i64} {
  func.func @_resnet_block_kernel(%arg0: i32, %arg1: memref<512x32xf32, #tpu.memory_space<vmem>>, %arg2: memref<32x32xf32, #tpu.memory_space<vmem>>, %arg3: memref<1x32xf32, #tpu.memory_space<vmem>>, %arg4: memref<32x128xf32, #tpu.memory_space<vmem>>, %arg5: memref<1x128xf32, #tpu.memory_space<vmem>>, %arg6: memref<32x128xf32, #tpu.memory_space<vmem>>, %arg7: memref<512x128xf32, #tpu.memory_space<vmem>>) attributes {dimension_semantics = [#tpu.dimension_semantics<parallel>], iteration_bounds = array<i64: 2>, scalar_prefetch = 0 : i64, scratch_operands = 0 : i64, tpu.core_type = #tpu.core_type<tc>, window_params = [{transform_indices = @transform_0, window_bounds = array<i64: 512, 32>}, {pipeline_mode = #tpu.pipeline_mode<synchronous>, transform_indices = @transform_1, window_bounds = array<i64: 32, 32>}, {pipeline_mode = #tpu.pipeline_mode<synchronous>, transform_indices = @transform_2, window_bounds = array<i64: 1, 32>}, {pipeline_mode = #tpu.pipeline_mode<synchronous>, transform_indices = @transform_3, window_bounds = array<i64: 32, 128>}, {pipeline_mode = #tpu.pipeline_mode<synchronous>, transform_indices = @transform_4, window_bounds = array<i64: 1, 128>}, {pipeline_mode = #tpu.pipeline_mode<synchronous>, transform_indices = @transform_5, window_bounds = array<i64: 32, 128>}, {transform_indices = @transform_6, window_bounds = array<i64: 512, 128>}]} {
    %c0 = arith.constant 0 : index
    %c0_0 = arith.constant 0 : index
    %0 = vector.load %arg1[%c0, %c0_0] : memref<512x32xf32, #tpu.memory_space<vmem>>, vector<512x32xf32>
    %cst = arith.constant 0.000000e+00 : f32
    %1 = vector.broadcast %cst : f32 to vector<512x32xf32>
    %2 = arith.maximumf %0, %1 : vector<512x32xf32>
    %c0_1 = arith.constant 0 : index
    %c0_2 = arith.constant 0 : index
    %3 = vector.load %arg2[%c0_1, %c0_2] : memref<32x32xf32, #tpu.memory_space<vmem>>, vector<32x32xf32>
    %cst_3 = arith.constant dense<0.000000e+00> : vector<512x32xf32>
    %4 = tpu.matmul %2, %3, %cst_3 {dimension_numbers = #tpu.dot_dimension_numbers<[1], [0], [0], [1], [0, 0, 1, 1], [], []>} : vector<512x32xf32>, vector<32x32xf32>, vector<512x32xf32> -> vector<512x32xf32>
    %c0_4 = arith.constant 0 : index
    %c0_5 = arith.constant 0 : index
    %5 = vector.load %arg3[%c0_4, %c0_5] : memref<1x32xf32, #tpu.memory_space<vmem>>, vector<1x32xf32>
    %6 = vector.broadcast %5 : vector<1x32xf32> to vector<512x32xf32>
    %7 = arith.addf %4, %6 : vector<512x32xf32>
    %cst_6 = arith.constant 0.000000e+00 : f32
    %8 = vector.broadcast %cst_6 : f32 to vector<512x32xf32>
    %9 = arith.maximumf %7, %8 : vector<512x32xf32>
    %c0_7 = arith.constant 0 : index
    %c0_8 = arith.constant 0 : index
    %10 = vector.load %arg4[%c0_7, %c0_8] : memref<32x128xf32, #tpu.memory_space<vmem>>, vector<32x128xf32>
    %cst_9 = arith.constant dense<0.000000e+00> : vector<512x128xf32>
    %11 = tpu.matmul %9, %10, %cst_9 {dimension_numbers = #tpu.dot_dimension_numbers<[1], [0], [0], [1], [0, 0, 1, 1], [], []>} : vector<512x32xf32>, vector<32x128xf32>, vector<512x128xf32> -> vector<512x128xf32>
    %c0_10 = arith.constant 0 : index
    %c0_11 = arith.constant 0 : index
    %12 = vector.load %arg5[%c0_10, %c0_11] : memref<1x128xf32, #tpu.memory_space<vmem>>, vector<1x128xf32>
    %13 = vector.broadcast %12 : vector<1x128xf32> to vector<512x128xf32>
    %14 = arith.addf %11, %13 : vector<512x128xf32>
    %c0_12 = arith.constant 0 : index
    %c0_13 = arith.constant 0 : index
    %15 = vector.load %arg6[%c0_12, %c0_13] : memref<32x128xf32, #tpu.memory_space<vmem>>, vector<32x128xf32>
    %cst_14 = arith.constant dense<0.000000e+00> : vector<512x128xf32>
    %16 = tpu.matmul %0, %15, %cst_14 {dimension_numbers = #tpu.dot_dimension_numbers<[1], [0], [0], [1], [0, 0, 1, 1], [], []>} : vector<512x32xf32>, vector<32x128xf32>, vector<512x128xf32> -> vector<512x128xf32>
    %17 = arith.addf %16, %14 : vector<512x128xf32>
    %c0_15 = arith.constant 0 : index
    %c0_16 = arith.constant 0 : index
    %18 = vector.load %arg7[%c0_15, %c0_16] : memref<512x128xf32, #tpu.memory_space<vmem>>, vector<512x128xf32>
    tpu.vector_store %arg7[%c0_15, %c0_16], %17 {strides = array<i32>} : memref<512x128xf32, #tpu.memory_space<vmem>>, vector<512x128xf32>,
    return
  }
  func.func @transform_0(%arg0: i32) -> (i32, i32) {
    %c0_i32 = arith.constant 0 : i32
    %c0_i32_0 = arith.constant 0 : i32
    return %arg0, %c0_i32 : i32, i32
  }
  func.func @transform_1(%arg0: i32) -> (i32, i32) {
    %c0_i32 = arith.constant 0 : i32
    %c0_i32_0 = arith.constant 0 : i32
    %c0_i32_1 = arith.constant 0 : i32
    return %c0_i32, %c0_i32_0 : i32, i32
  }
  func.func @transform_2(%arg0: i32) -> (i32, i32) {
    %c0_i32 = arith.constant 0 : i32
    %c0_i32_0 = arith.constant 0 : i32
    %c0_i32_1 = arith.constant 0 : i32
    return %c0_i32, %c0_i32_0 : i32, i32
  }
  func.func @transform_3(%arg0: i32) -> (i32, i32) {
    %c0_i32 = arith.constant 0 : i32
    %c0_i32_0 = arith.constant 0 : i32
    %c0_i32_1 = arith.constant 0 : i32
    return %c0_i32, %c0_i32_0 : i32, i32
  }
  func.func @transform_4(%arg0: i32) -> (i32, i32) {
    %c0_i32 = arith.constant 0 : i32
    %c0_i32_0 = arith.constant 0 : i32
    %c0_i32_1 = arith.constant 0 : i32
    return %c0_i32, %c0_i32_0 : i32, i32
  }
  func.func @transform_5(%arg0: i32) -> (i32, i32) {
    %c0_i32 = arith.constant 0 : i32
    %c0_i32_0 = arith.constant 0 : i32
    %c0_i32_1 = arith.constant 0 : i32
    return %c0_i32, %c0_i32_0 : i32, i32
  }
  func.func @transform_6(%arg0: i32) -> (i32, i32) {
    %c0_i32 = arith.constant 0 : i32
    %c0_i32_0 = arith.constant 0 : i32
    return %arg0, %c0_i32 : i32, i32
  }
}

</mosaic_0001>

<llo_original>
// kernel: tpu_custom_call.1
$region0: #{tpu_custom_call.1}
  #allocation0 [shape = 'u32[]', space=smem, size = 0x4, offset = 0x4, fixed_abs, tag = 'smem constant byte address 0x4 - core index']
  #allocation1 [shape = 'u32[144,128]{1,0:T(1,128)}', space=vmem, size = 0x12000, scoped, tag = 'internal scratch']
  %s0 = inlined_call_operand.vmem [shape: f32[1024,32], index: 0, kind: input, shape index: {}]
  %s1 = inlined_call_operand.vmem [shape: f32[32,32], index: 1, kind: input, shape index: {}]
  %s2 = inlined_call_operand.vmem [shape: f32[1,32], index: 2, kind: input, shape index: {}]
  %s3 = inlined_call_operand.vmem [shape: f32[32,128], index: 3, kind: input, shape index: {}]
  %s4 = inlined_call_operand.vmem [shape: f32[1,128], index: 4, kind: input, shape index: {}]
  %s5 = inlined_call_operand.vmem [shape: f32[32,128], index: 5, kind: input, shape index: {}]
  %s6 = inlined_call_operand.hbm [shape: f32[1024,128], index: 6, kind: output, shape index: {}]
  %s7 = sld [smem:[#allocation0]]
  $region57: #{tpu_custom_call.1} parent=0
    _
  %s9 = ssub.s32 1, %s7
  %s10 = scalar_select 0, %s9, %s7
  $region1: #{tpu_custom_call.1} parent=0
    #allocation2 [shape = 'u8[524288]{0}', space=vmem, size = 0x80000, scoped, tag = 'output window, operand 0']
    #allocation3 [shape = 's32[2]{0}', space=sflag, size = 0x8, scoped, tag = 'scoped memory for tpu_custom_call.1']
    %11 = vsyncpa [#allocation3], 0
    %s12 = scalar_lea.sflag [#allocation3], 1
    %13 = vsyncpa %s12, 0
    loop: start=0, step=1, limit=4
    $region2: #{tpu_custom_call.1} parent=1 // loop_pre_header
      _
    $region3: #{tpu_custom_call.1} parent=1 // loop_header
      %s15 = sphi 0, %s19
      %p16 = scmp.ge.s32.totalorder %s15, 4
      %s25 = sphi 0, %s27
      %s28 = sphi 0, %s25
      %s29 = sphi 0, %s28
      %s45 = sphi 0, %s29
      %s49 = sphi 0, %s49
      %s51 = sphi 0, %s49
      %s52 = sphi 0, %s51
      %s66 = sphi 0, %s52
      %s70 = sphi 0, %s70
      %s72 = sphi 0, %s70
      %s73 = sphi 0, %s72
      %s87 = sphi 0, %s73
      %s91 = sphi 0, %s91
      %s93 = sphi 0, %s91
      %s94 = sphi 0, %s93
      %s108 = sphi 0, %s94
      %s112 = sphi 0, %s112
      %s114 = sphi 0, %s112
      %s115 = sphi 0, %s114
      %s129 = sphi 0, %s115
      %s133 = sphi 0, %s133
      %s135 = sphi 0, %s133
      %s136 = sphi 0, %s135
      %s150 = sphi 0, %s136
      %s156 = sphi 0, %s158
      %s159 = sphi 0, %s156
      %s160 = sphi 0, %s159
      %s176 = sphi 0, %s160
    $region4: #{tpu_custom_call.1} parent=1 // loop_header_branch
      %18 = sbr.rel (%p16) target = $region8
    $region5: #{tpu_custom_call.1} parent=1 // loop_body
      %s20 = ssub.s32 %s15, 1
      %s21 = ssub.s32 %s15, 2
      %s22 = sadd.s32 %s15, 1
      %s23 = ssub.s32 %s15, %s22
      %p24 = scmp.eq.s32.totalorder %s23, 0
      %s26 = sadd.s32 %s25, 1
      %s27 = scalar_select %p24, %s25, %s26
      %p30 = pneg %p24
      %p31 = scmp.eq.s32.totalorder %s15, 1
      %p32 = por %p30, %p31
      %p33 = scmp.ne.s32.totalorder %s25, %s28
      %p34 = scmp.eq.s32.totalorder %s15, 0
      %p35 = por %p33, %p34
      %p36 = scmp.ne.s32.totalorder %s25, %s28
      %p37 = scmp.eq.s32.totalorder %s20, 1
      %p38 = por %p36, %p37
      %p39 = scmp.ne.s32.totalorder %s28, %s29
      %p40 = scmp.eq.s32.totalorder %s20, 0
      %p41 = por %p39, %p40
      %p42 = scmp.ne.s32.totalorder %s28, %s29
      %p43 = scmp.eq.s32.totalorder %s21, 1
      %p44 = por %p42, %p43
      %p46 = scmp.ne.s32.totalorder %s29, %s45
      %p47 = scmp.eq.s32.totalorder %s21, 0
      %p48 = por %p46, %p47
      %s50 = sadd.s32 %s49, 1
      %p53 = scmp.eq.s32.totalorder %s15, 1
      %p54 = scmp.ne.s32.totalorder %s49, %s51
      %p55 = scmp.eq.s32.totalorder %s15, 0
      %p56 = por %p54, %p55
      %p57 = scmp.ne.s32.totalorder %s49, %s51
      %p58 = scmp.eq.s32.totalorder %s20, 1
      %p59 = por %p57, %p58
      %p60 = scmp.ne.s32.totalorder %s51, %s52
      %p61 = scmp.eq.s32.totalorder %s20, 0
      %p62 = por %p60, %p61
      %p63 = scmp.ne.s32.totalorder %s51, %s52
      %p64 = scmp.eq.s32.totalorder %s21, 1
      %p65 = por %p63, %p64
      %p67 = scmp.ne.s32.totalorder %s52, %s66
      %p68 = scmp.eq.s32.totalorder %s21, 0
      %p69 = por %p67, %p68
      %s71 = sadd.s32 %s70, 1
      %p74 = scmp.eq.s32.totalorder %s15, 1
      %p75 = scmp.ne.s32.totalorder %s70, %s72
      %p76 = scmp.eq.s32.totalorder %s15, 0
      %p77 = por %p75, %p76
      %p78 = scmp.ne.s32.totalorder %s70, %s72
      %p79 = scmp.eq.s32.totalorder %s20, 1
      %p80 = por %p78, %p79
      %p81 = scmp.ne.s32.totalorder %s72, %s73
      %p82 = scmp.eq.s32.totalorder %s20, 0
      %p83 = por %p81, %p82
      %p84 = scmp.ne.s32.totalorder %s72, %s73
      %p85 = scmp.eq.s32.totalorder %s21, 1
      %p86 = por %p84, %p85
      %p88 = scmp.ne.s32.totalorder %s73, %s87
      %p89 = scmp.eq.s32.totalorder %s21, 0
      %p90 = por %p88, %p89
      %s92 = sadd.s32 %s91, 1
      %p95 = scmp.eq.s32.totalorder %s15, 1
      %p96 = scmp.ne.s32.totalorder %s91, %s93
      %p97 = scmp.eq.s32.totalorder %s15, 0
      %p98 = por %p96, %p97
      %p99 = scmp.ne.s32.totalorder %s91, %s93
      %p100 = scmp.eq.s32.totalorder %s20, 1
      %p101 = por %p99, %p100
      %p102 = scmp.ne.s32.totalorder %s93, %s94
      %p103 = scmp.eq.s32.totalorder %s20, 0
      %p104 = por %p102, %p103
      %p105 = scmp.ne.s32.totalorder %s93, %s94
      %p106 = scmp.eq.s32.totalorder %s21, 1
      %p107 = por %p105, %p106
      %p109 = scmp.ne.s32.totalorder %s94, %s108
      %p110 = scmp.eq.s32.totalorder %s21, 0
      %p111 = por %p109, %p110
      %s113 = sadd.s32 %s112, 1
      %p116 = scmp.eq.s32.totalorder %s15, 1
      %p117 = scmp.ne.s32.totalorder %s112, %s114
      %p118 = scmp.eq.s32.totalorder %s15, 0
      %p119 = por %p117, %p118
      %p120 = scmp.ne.s32.totalorder %s112, %s114
      %p121 = scmp.eq.s32.totalorder %s20, 1
      %p122 = por %p120, %p121
      %p123 = scmp.ne.s32.totalorder %s114, %s115
      %p124 = scmp.eq.s32.totalorder %s20, 0
      %p125 = por %p123, %p124
      %p126 = scmp.ne.s32.totalorder %s114, %s115
      %p127 = scmp.eq.s32.totalorder %s21, 1
      %p128 = por %p126, %p127
      %p130 = scmp.ne.s32.totalorder %s115, %s129
      %p131 = scmp.eq.s32.totalorder %s21, 0
      %p132 = por %p130, %p131
      %s134 = sadd.s32 %s133, 1
      %p137 = scmp.eq.s32.totalorder %s15, 1
      %p138 = scmp.ne.s32.totalorder %s133, %s135
      %p139 = scmp.eq.s32.totalorder %s15, 0
      %p140 = por %p138, %p139
      %p141 = scmp.ne.s32.totalorder %s133, %s135
      %p142 = scmp.eq.s32.totalorder %s20, 1
      %p143 = por %p141, %p142
      %p144 = scmp.ne.s32.totalorder %s135, %s136
      %p145 = scmp.eq.s32.totalorder %s20, 0
      %p146 = por %p144, %p145
      %p147 = scmp.ne.s32.totalorder %s135, %s136
      %p148 = scmp.eq.s32.totalorder %s21, 1
      %p149 = por %p147, %p148
      %p151 = scmp.ne.s32.totalorder %s136, %s150
      %p152 = scmp.eq.s32.totalorder %s21, 0
      %p153 = por %p151, %p152
      %s154 = ssub.s32 %s15, %s22
      %p155 = scmp.eq.s32.totalorder %s154, 0
      %s157 = sadd.s32 %s156, 1
      %s158 = scalar_select %p155, %s156, %s157
      %p161 = pneg %p155
      %p162 = scmp.eq.s32.totalorder %s15, 1
      %p163 = por %p161, %p162
      %p164 = scmp.ne.s32.totalorder %s156, %s159
      %p165 = scmp.eq.s32.totalorder %s15, 0
      %p166 = por %p164, %p165
      %p167 = scmp.ne.s32.totalorder %s156, %s159
      %p168 = scmp.eq.s32.totalorder %s20, 1
      %p169 = por %p167, %p168
      %p170 = scmp.ne.s32.totalorder %s159, %s160
      %p171 = scmp.eq.s32.totalorder %s20, 0
      %p172 = por %p170, %p171
      %p173 = scmp.ne.s32.totalorder %s159, %s160
      %p174 = scmp.eq.s32.totalorder %s21, 1
      %p175 = por %p173, %p174
      %p177 = scmp.ne.s32.totalorder %s160, %s176
      %p178 = scmp.eq.s32.totalorder %s21, 0
      %p179 = por %p177, %p178
      %p180 = scmp.le.s32.totalorder 1, %s15
      %p181 = scmp.lt.s32.totalorder %s15, 3
      %p182 = pnand %p180, %p181
      %p183 = pneg %p182
      // Predicated region
      $region9: #{tpu_custom_call.1} parent=5 // pred_check
        _
      $region10: #{tpu_custom_call.1} parent=5 // pred_check_branch
        %185 = sbr.rel (%p182) target = $region12
      $region11: #{tpu_custom_call.1} parent=5 // pred_region
        %s186 = ssub.s32 %s15, 1
        // Predicated region
        $region13: #{tpu_custom_call.1} parent=11 // pred_check
          %p187 = pneg %p62
        $region14: #{tpu_custom_call.1} parent=11 // pred_check_branch
          %189 = sbr.rel (%p187) target = $region16
        $region15: #{tpu_custom_call.1} parent=11 // pred_region
          _
        $region16: #{tpu_custom_call.1} parent=11 // pred_fallthru
          _
        // Predicated region
        $region17: #{tpu_custom_call.1} parent=11 // pred_check
          %p190 = pneg %p83
        $region18: #{tpu_custom_call.1} parent=11 // pred_check_branch
          %192 = sbr.rel (%p190) target = $region20
        $region19: #{tpu_custom_call.1} parent=11 // pred_region
          _
        $region20: #{tpu_custom_call.1} parent=11 // pred_fallthru
          _
        // Predicated region
        $region21: #{tpu_custom_call.1} parent=11 // pred_check
          %p193 = pneg %p104
        $region22: #{tpu_custom_call.1} parent=11 // pred_check_branch
          %195 = sbr.rel (%p193) target = $region24
        $region23: #{tpu_custom_call.1} parent=11 // pred_region
          _
        $region24: #{tpu_custom_call.1} parent=11 // pred_fallthru
          _
        // Predicated region
        $region25: #{tpu_custom_call.1} parent=11 // pred_check
          %p196 = pneg %p125
        $region26: #{tpu_custom_call.1} parent=11 // pred_check_branch
          %198 = sbr.rel (%p196) target = $region28
        $region27: #{tpu_custom_call.1} parent=11 // pred_region
          _
        $region28: #{tpu_custom_call.1} parent=11 // pred_fallthru
          _
        // Predicated region
        $region29: #{tpu_custom_call.1} parent=11 // pred_check
          %p199 = pneg %p146
        $region30: #{tpu_custom_call.1} parent=11 // pred_check_branch
          %201 = sbr.rel (%p199) target = $region32
        $region31: #{tpu_custom_call.1} parent=11 // pred_region
          _
        $region32: #{tpu_custom_call.1} parent=11 // pred_fallthru
          _
      $region12: #{tpu_custom_call.1} parent=5 // pred_fallthru
        _
      %p202 = scmp.lt.s32.totalorder %s15, 2
      // Predicated region
      $region33: #{tpu_custom_call.1} parent=5 // pred_check
        %p203 = pneg %p202
      $region34: #{tpu_custom_call.1} parent=5 // pred_check_branch
        %205 = sbr.rel (%p203) target = $region36
      $region35: #{tpu_custom_call.1} parent=5 // pred_region
        // Predicated region
        $region37: #{tpu_custom_call.1} parent=35 // pred_check
          %p206 = pneg %p35
        $region38: #{tpu_custom_call.1} parent=35 // pred_check_branch
          %208 = sbr.rel (%p206) target = $region40
        $region39: #{tpu_custom_call.1} parent=35 // pred_region
          %s209 = smul.u32 64, %s15
          %p210 = scmp.lt.s32.totalorder %s209, 127
          %s211 = scalar_select %p210, %s209, 127
          %s212 = smul.addr %s211, 8
          %s213 = scalar_lea.vmem %s0, %s212
          %s214 = smul.u32 64, %s15
        $region40: #{tpu_custom_call.1} parent=35 // pred_fallthru
          _
      $region36: #{tpu_custom_call.1} parent=5 // pred_fallthru
        _
      %p215 = scmp.le.s32.totalorder 1, %s15
      %p216 = scmp.lt.s32.totalorder %s15, 3
      %p217 = pnand %p215, %p216
      %p218 = pneg %p217
      // Predicated region
      $region41: #{tpu_custom_call.1} parent=5 // pred_check
        _
      $region42: #{tpu_custom_call.1} parent=5 // pred_check_branch
        %220 = sbr.rel (%p217) target = $region44
      $region43: #{tpu_custom_call.1} parent=5 // pred_region
        %s221 = ssub.s32 %s15, 1
        %s222 = smul.u32 64, %s20
        %p223 = scmp.lt.s32.totalorder %s222, 127
        %s224 = scalar_select %p223, %s222, 127
        %s225 = smul.addr %s224, 8
        %s226 = scalar_lea.vmem %s0, %s225
        %p227 = pneg %p41
        %p228 = pneg %p38
        %p229 = pneg %p62
        %p230 = pneg %p59
        %p231 = pneg %p83
        %p232 = pneg %p80
        %p233 = pneg %p104
        %p234 = pneg %p101
        %p235 = pneg %p125
        %p236 = pneg %p122
        %p237 = pneg %p146
        %p238 = pneg %p143
        %p239 = pneg %p172
        %p240 = pneg %p169
        %s241 = sand.u32 %s159, 1
        %s242 = scalar_lea.sflag [#allocation3], %s241
        %s243 = sand.u32 %s159, 1
        %s244 = smul.addr %s243, 512
        %s245 = scalar_lea.vmem [#allocation2], %s244
        %s246 = smul.u32 64, %s20
        %p247 = scmp.lt.s32.totalorder %s246, 127
        %s248 = scalar_select %p247, %s246, 127
        %s249 = smul.addr %s248, 8
        %s250 = scalar_lea.vmem %s0, %s249
        %s251 = smul.u32 64, %s20
        %s252 = smul.u32 64, %s20
        %v253 = vld [vmem:[%s250] sm:$0xff]
        %v254 = vld [vmem:[%s250 + $0x8] sm:$0xff]
        %v255 = vld [vmem:[%s250 + $0x10] sm:$0xff]
        %v256 = vld [vmem:[%s250 + $0x18] sm:$0xff]
        %v257 = vld [vmem:[%s250 + $0x20] sm:$0xff]
        %v258 = vld [vmem:[%s250 + $0x28] sm:$0xff]
        %v259 = vld [vmem:[%s250 + $0x30] sm:$0xff]
        %v260 = vld [vmem:[%s250 + $0x38] sm:$0xff]
        %v261 = vld [vmem:[%s250 + $0x40] sm:$0xff]
        %v262 = vld [vmem:[%s250 + $0x48] sm:$0xff]
        %v263 = vld [vmem:[%s250 + $0x50] sm:$0xff]
        %v264 = vld [vmem:[%s250 + $0x58] sm:$0xff]
        %v265 = vld [vmem:[%s250 + $0x60] sm:$0xff]
        %v266 = vld [vmem:[%s250 + $0x68] sm:$0xff]
        %v267 = vld [vmem:[%s250 + $0x70] sm:$0xff]
        %v268 = vld [vmem:[%s250 + $0x78] sm:$0xff]
        %v269 = vld [vmem:[%s250 + $0x80] sm:$0xff]
        %v270 = vld [vmem:[%s250 + $0x88] sm:$0xff]
        %v271 = vld [vmem:[%s250 + $0x90] sm:$0xff]
        %v272 = vld [vmem:[%s250 + $0x98] sm:$0xff]
        %v273 = vld [vmem:[%s250 + $0xa0] sm:$0xff]
        %v274 = vld [vmem:[%s250 + $0xa8] sm:$0xff]
        %v275 = vld [vmem:[%s250 + $0xb0] sm:$0xff]
        %v276 = vld [vmem:[%s250 + $0xb8] sm:$0xff]
        %v277 = vld [vmem:[%s250 + $0xc0] sm:$0xff]
        %v278 = vld [vmem:[%s250 + $0xc8] sm:$0xff]
        %v279 = vld [vmem:[%s250 + $0xd0] sm:$0xff]
        %v280 = vld [vmem:[%s250 + $0xd8] sm:$0xff]
        %v281 = vld [vmem:[%s250 + $0xe0] sm:$0xff]
        %v282 = vld [vmem:[%s250 + $0xe8] sm:$0xff]
        %v283 = vld [vmem:[%s250 + $0xf0] sm:$0xff]
        %v284 = vld [vmem:[%s250 + $0xf8] sm:$0xff]
        %v285 = vld [vmem:[%s250 + $0x100] sm:$0xff]
        %v286 = vld [vmem:[%s250 + $0x108] sm:$0xff]
        %v287 = vld [vmem:[%s250 + $0x110] sm:$0xff]
        %v288 = vld [vmem:[%s250 + $0x118] sm:$0xff]
        %v289 = vld [vmem:[%s250 + $0x120] sm:$0xff]
        %v290 = vld [vmem:[%s250 + $0x128] sm:$0xff]
        %v291 = vld [vmem:[%s250 + $0x130] sm:$0xff]
        %v292 = vld [vmem:[%s250 + $0x138] sm:$0xff]
        %v293 = vld [vmem:[%s250 + $0x140] sm:$0xff]
        %v294 = vld [vmem:[%s250 + $0x148] sm:$0xff]
        %v295 = vld [vmem:[%s250 + $0x150] sm:$0xff]
        %v296 = vld [vmem:[%s250 + $0x158] sm:$0xff]
        %v297 = vld [vmem:[%s250 + $0x160] sm:$0xff]
        %v298 = vld [vmem:[%s250 + $0x168] sm:$0xff]
        %v299 = vld [vmem:[%s250 + $0x170] sm:$0xff]
        %v300 = vld [vmem:[%s250 + $0x178] sm:$0xff]
        %v301 = vld [vmem:[%s250 + $0x180] sm:$0xff]
        %v302 = vld [vmem:[%s250 + $0x188] sm:$0xff]
        %v303 = vld [vmem:[%s250 + $0x190] sm:$0xff]
        %v304 = vld [vmem:[%s250 + $0x198] sm:$0xff]
        %v305 = vld [vmem:[%s250 + $0x1a0] sm:$0xff]
        %v306 = vld [vmem:[%s250 + $0x1a8] sm:$0xff]
        %v307 = vld [vmem:[%s250 + $0x1b0] sm:$0xff]
        %v308 = vld [vmem:[%s250 + $0x1b8] sm:$0xff]
        %v309 = vld [vmem:[%s250 + $0x1c0] sm:$0xff]
        %v310 = vld [vmem:[%s250 + $0x1c8] sm:$0xff]
        %v311 = vld [vmem:[%s250 + $0x1d0] sm:$0xff]
        %v312 = vld [vmem:[%s250 + $0x1d8] sm:$0xff]
        %v313 = vld [vmem:[%s250 + $0x1e0] sm:$0xff]
        %v314 = vld [vmem:[%s250 + $0x1e8] sm:$0xff]
        %v315 = vld [vmem:[%s250 + $0x1f0] sm:$0xff]
        %v316 = vld [vmem:[%s250 + $0x1f8] sm:$0xff]
        %v317 = vmax.f32 %v253, 0.0
        %v318 = vmax.f32 %v254, 0.0
        %v319 = vmax.f32 %v255, 0.0
        %v320 = vmax.f32 %v256, 0.0
        %v321 = vmax.f32 %v257, 0.0
        %v322 = vmax.f32 %v258, 0.0
        %v323 = vmax.f32 %v259, 0.0
        %v324 = vmax.f32 %v260, 0.0
        %v325 = vmax.f32 %v261, 0.0
        %v326 = vmax.f32 %v262, 0.0
        %v327 = vmax.f32 %v263, 0.0
        %v328 = vmax.f32 %v264, 0.0
        %v329 = vmax.f32 %v265, 0.0
        %v330 = vmax.f32 %v266, 0.0
        %v331 = vmax.f32 %v267, 0.0
        %v332 = vmax.f32 %v268, 0.0
        %v333 = vmax.f32 %v269, 0.0
        %v334 = vmax.f32 %v270, 0.0
        %v335 = vmax.f32 %v271, 0.0
        %v336 = vmax.f32 %v272, 0.0
        %v337 = vmax.f32 %v273, 0.0
        %v338 = vmax.f32 %v274, 0.0
        %v339 = vmax.f32 %v275, 0.0
        %v340 = vmax.f32 %v276, 0.0
        %v341 = vmax.f32 %v277, 0.0
        %v342 = vmax.f32 %v278, 0.0
        %v343 = vmax.f32 %v279, 0.0
        %v344 = vmax.f32 %v280, 0.0
        %v345 = vmax.f32 %v281, 0.0
        %v346 = vmax.f32 %v282, 0.0
        %v347 = vmax.f32 %v283, 0.0
        %v348 = vmax.f32 %v284, 0.0
        %v349 = vmax.f32 %v285, 0.0
        %v350 = vmax.f32 %v286, 0.0
        %v351 = vmax.f32 %v287, 0.0
        %v352 = vmax.f32 %v288, 0.0
        %v353 = vmax.f32 %v289, 0.0
        %v354 = vmax.f32 %v290, 0.0
        %v355 = vmax.f32 %v291, 0.0
        %v356 = vmax.f32 %v292, 0.0
        %v357 = vmax.f32 %v293, 0.0
        %v358 = vmax.f32 %v294, 0.0
        %v359 = vmax.f32 %v295, 0.0
        %v360 = vmax.f32 %v296, 0.0
        %v361 = vmax.f32 %v297, 0.0
        %v362 = vmax.f32 %v298, 0.0
        %v363 = vmax.f32 %v299, 0.0
        %v364 = vmax.f32 %v300, 0.0
        %v365 = vmax.f32 %v301, 0.0
        %v366 = vmax.f32 %v302, 0.0
        %v367 = vmax.f32 %v303, 0.0
        %v368 = vmax.f32 %v304, 0.0
        %v369 = vmax.f32 %v305, 0.0
        %v370 = vmax.f32 %v306, 0.0
        %v371 = vmax.f32 %v307, 0.0
        %v372 = vmax.f32 %v308, 0.0
        %v373 = vmax.f32 %v309, 0.0
        %v374 = vmax.f32 %v310, 0.0
        %v375 = vmax.f32 %v311, 0.0
        %v376 = vmax.f32 %v312, 0.0
        %v377 = vmax.f32 %v313, 0.0
        %v378 = vmax.f32 %v314, 0.0
        %v379 = vmax.f32 %v315, 0.0
        %v380 = vmax.f32 %v316, 0.0
        %v381 = vld [vmem:[%s1] sm:$0xff]
        %v382 = vld [vmem:[%s1 + $0x8] sm:$0xff]
        %v383 = vld [vmem:[%s1 + $0x10] sm:$0xff]
        %v384 = vld [vmem:[%s1 + $0x18] sm:$0xff]
        %v385 = vld [vmem:[%s2] sm:$0x1]
        %v387 = vlaneseq
        %v388 = vshrl.u32 %v387, 7
        %v389 = vsub.s32 0, %v388
        %v390 = vrot.slane %v385, %v389
        %vm392 = vcmask 261120
        %v394 = vsel %vm392, %v317, 0
        %v397 = vsel %vm392, %v318, 0
        %v400 = vsel %vm392, %v319, 0
        %v403 = vsel %vm392, %v320, 0
        %v406 = vsel %vm392, %v321, 0
        %v409 = vsel %vm392, %v322, 0
        %v412 = vsel %vm392, %v323, 0
        %v415 = vsel %vm392, %v324, 0
        %v418 = vsel %vm392, %v325, 0
        %v421 = vsel %vm392, %v326, 0
        %v424 = vsel %vm392, %v327, 0
        %v427 = vsel %vm392, %v328, 0
        %v430 = vsel %vm392, %v329, 0
        %v433 = vsel %vm392, %v330, 0
        %v436 = vsel %vm392, %v331, 0
        %v439 = vsel %vm392, %v332, 0
        %v442 = vsel %vm392, %v333, 0
        %v445 = vsel %vm392, %v334, 0
        %v448 = vsel %vm392, %v335, 0
        %v451 = vsel %vm392, %v336, 0
        %v454 = vsel %vm392, %v337, 0
        %v457 = vsel %vm392, %v338, 0
        %v460 = vsel %vm392, %v339, 0
        %v463 = vsel %vm392, %v340, 0
        %v466 = vsel %vm392, %v341, 0
        %v469 = vsel %vm392, %v342, 0
        %v472 = vsel %vm392, %v343, 0
        %v475 = vsel %vm392, %v344, 0
        %v478 = vsel %vm392, %v345, 0
        %v481 = vsel %vm392, %v346, 0
        %v484 = vsel %vm392, %v347, 0
        %v487 = vsel %vm392, %v348, 0
        %v490 = vsel %vm392, %v349, 0
        %v493 = vsel %vm392, %v350, 0
        %v496 = vsel %vm392, %v351, 0
        %v499 = vsel %vm392, %v352, 0
        %v502 = vsel %vm392, %v353, 0
        %v505 = vsel %vm392, %v354, 0
        %v508 = vsel %vm392, %v355, 0
        %v511 = vsel %vm392, %v356, 0
        %v514 = vsel %vm392, %v357, 0
        %v517 = vsel %vm392, %v358, 0
        %v520 = vsel %vm392, %v359, 0
        %v523 = vsel %vm392, %v360, 0
        %v526 = vsel %vm392, %v361, 0
        %v529 = vsel %vm392, %v362, 0
        %v532 = vsel %vm392, %v363, 0
        %v535 = vsel %vm392, %v364, 0
        %v538 = vsel %vm392, %v365, 0
        %v541 = vsel %vm392, %v366, 0
        %v544 = vsel %vm392, %v367, 0
        %v547 = vsel %vm392, %v368, 0
        %v550 = vsel %vm392, %v369, 0
        %v553 = vsel %vm392, %v370, 0
        %v556 = vsel %vm392, %v371, 0
        %v559 = vsel %vm392, %v372, 0
        %v562 = vsel %vm392, %v373, 0
        %v565 = vsel %vm392, %v374, 0
        %v568 = vsel %vm392, %v375, 0
        %v571 = vsel %vm392, %v376, 0
        %v574 = vsel %vm392, %v377, 0
        %v577 = vsel %vm392, %v378, 0
        %v580 = vsel %vm392, %v379, 0
        %v583 = vsel %vm392, %v380, 0
        %585 = vmatprep.subr.mxu0 0.0
        %586 = vmatpush1.msra.mxu0 %v381
        %587 = vmatprep.subr.mxu0 0.0
        %588 = vmatpush1.msra.mxu0 %v382
        %589 = vmatprep.subr.mxu0 0.0
        %590 = vmatpush1.msra.mxu0 %v383
        %591 = vmatprep.subr.mxu0 0.0
        %592 = vmatpush1.msra.mxu0 %v384
        %593 = vmatprep.subr.mxu0 0.0
        %594 = vmatpush1.msra.mxu0 0.0
        %595 = vmatprep.subr.mxu0 0.0
        %596 = vmatpush1.msra.mxu0 0.0
        %597 = vmatprep.subr.mxu0 0.0
        %598 = vmatpush1.msra.mxu0 0.0
        %599 = vmatprep.subr.mxu0 0.0
        %600 = vmatpush1.msra.mxu0 0.0
        %601 = vmatprep.subr.mxu0 0.0
        %602 = vmatpush1.msra.mxu0 0.0
        %603 = vmatprep.subr.mxu0 0.0
        %604 = vmatpush1.msra.mxu0 0.0
        %605 = vmatprep.subr.mxu0 0.0
        %606 = vmatpush1.msra.mxu0 0.0
        %607 = vmatprep.subr.mxu0 0.0
        %608 = vmatpush1.msra.mxu0 0.0
        %609 = vmatprep.subr.mxu0 0.0
        %610 = vmatpush1.msra.mxu0 0.0
        %611 = vmatprep.subr.mxu0 0.0
        %612 = vmatpush1.msra.mxu0 0.0
        %613 = vmatprep.subr.mxu0 0.0
        %614 = vmatpush1.msra.mxu0 0.0
        %615 = vmatprep.subr.mxu0 0.0
        %616 = vmatpush1.msra.mxu0 0.0
        %617 = vmatprep.subr.mxu0 0.0
        %618 = vmatpush1.msra.mxu0 0.0
        %619 = vmatprep.subr.mxu0 0.0
        %620 = vmatpush1.msra.mxu0 0.0
        %621 = vmatprep.subr.mxu0 0.0
        %622 = vmatpush1.msra.mxu0 0.0
        %623 = vmatprep.subr.mxu0 0.0
        %624 = vmatpush1.msra.mxu0 0.0
        %625 = vmatprep.subr.mxu0 0.0
        %626 = vmatpush1.msra.mxu0 0.0
        %627 = vmatprep.subr.mxu0 0.0
        %628 = vmatpush1.msra.mxu0 0.0
        %629 = vmatprep.subr.mxu0 0.0
        %630 = vmatpush1.msra.mxu0 0.0
        %631 = vmatprep.subr.mxu0 0.0
        %632 = vmatpush1.msra.mxu0 0.0
        %633 = vmatprep.subr.mxu0 0.0
        %634 = vmatpush1.msra.mxu0 0.0
        %635 = vmatprep.subr.mxu0 0.0
        %636 = vmatpush1.msra.mxu0 0.0
        %637 = vmatprep.subr.mxu0 0.0
        %638 = vmatpush1.msra.mxu0 0.0
        %639 = vmatprep.subr.mxu0 0.0
        %640 = vmatpush1.msra.mxu0 0.0
        %641 = vmatprep.subr.mxu0 0.0
        %642 = vmatpush1.msra.mxu0 0.0
        %643 = vmatprep.subr.mxu0 0.0
        %644 = vmatpush1.msra.mxu0 0.0
        %645 = vmatprep.subr.mxu0 0.0
        %646 = vmatpush1.msra.mxu0 0.0
        %647 = vmatprep.subr.mxu0 0.0
        %648 = vmatpush1.msra.mxu0 0.0
        %649 = vmatprep.mubr.f32.mxu0 0.0
        %650 = vmatmul.mubr.f32.gmra.mrb[0].mxu0 %v394
        %v651 = vpop.f32.mrb[0].mxu0
        %v652 = vadd.f32 %v390, %v651
        %v653 = vpop.f32.mrb[0].mxu0
        %654 = vmatprep.mubr.f32.mxu0 0.0
        %655 = vmatmul.mubr.f32.gmra.mrb[0].mxu0 %v397
        %v656 = vpop.f32.mrb[0].mxu0
        %v657 = vadd.f32 %v390, %v656
        %v658 = vpop.f32.mrb[0].mxu0
        %659 = vmatprep.mubr.f32.mxu0 0.0
        %660 = vmatmul.mubr.f32.gmra.mrb[0].mxu0 %v400
        %v661 = vpop.f32.mrb[0].mxu0
        %v662 = vadd.f32 %v390, %v661
        %v663 = vpop.f32.mrb[0].mxu0
        %664 = vmatprep.mubr.f32.mxu0 0.0
        %665 = vmatmul.mubr.f32.gmra.mrb[0].mxu0 %v403
        %v666 = vpop.f32.mrb[0].mxu0
        %v667 = vadd.f32 %v390, %v666
        %v668 = vpop.f32.mrb[0].mxu0
        %669 = vmatprep.mubr.f32.mxu0 0.0
        %670 = vmatmul.mubr.f32.gmra.mrb[0].mxu0 %v406
        %v671 = vpop.f32.mrb[0].mxu0
        %v672 = vadd.f32 %v390, %v671
        %v673 = vpop.f32.mrb[0].mxu0
        %674 = vmatprep.mubr.f32.mxu0 0.0
        %675 = vmatmul.mubr.f32.gmra.mrb[0].mxu0 %v409
        %v676 = vpop.f32.mrb[0].mxu0
        %v677 = vadd.f32 %v390, %v676
        %v678 = vpop.f32.mrb[0].mxu0
        %679 = vmatprep.mubr.f32.mxu0 0.0
        %680 = vmatmul.mubr.f32.gmra.mrb[0].mxu0 %v412
        %v681 = vpop.f32.mrb[0].mxu0
        %v682 = vadd.f32 %v390, %v681
        %v683 = vpop.f32.mrb[0].mxu0
        %684 = vmatprep.mubr.f32.mxu0 0.0
        %685 = vmatmul.mubr.f32.gmra.mrb[0].mxu0 %v415
        %v686 = vpop.f32.mrb[0].mxu0
        %v687 = vadd.f32 %v390, %v686
        %v688 = vpop.f32.mrb[0].mxu0
        %689 = vmatprep.mubr.f32.mxu0 0.0
        %690 = vmatmul.mubr.f32.gmra.mrb[0].mxu0 %v418
        %v691 = vpop.f32.mrb[0].mxu0
        %v692 = vadd.f32 %v390, %v691
        %v693 = vpop.f32.mrb[0].mxu0
        %694 = vmatprep.mubr.f32.mxu0 0.0
        %695 = vmatmul.mubr.f32.gmra.mrb[0].mxu0 %v421
        %v696 = vpop.f32.mrb[0].mxu0
        %v697 = vadd.f32 %v390, %v696
        %v698 = vpop.f32.mrb[0].mxu0
        %699 = vmatprep.mubr.f32.mxu0 0.0
        %700 = vmatmul.mubr.f32.gmra.mrb[0].mxu0 %v424
        %v701 = vpop.f32.mrb[0].mxu0
        %v702 = vadd.f32 %v390, %v701
        %v703 = vpop.f32.mrb[0].mxu0
        %704 = vmatprep.mubr.f32.mxu0 0.0
        %705 = vmatmul.mubr.f32.gmra.mrb[0].mxu0 %v427
        %v706 = vpop.f32.mrb[0].mxu0
        %v707 = vadd.f32 %v390, %v706
        %v708 = vpop.f32.mrb[0].mxu0
        %709 = vmatprep.mubr.f32.mxu0 0.0
        %710 = vmatmul.mubr.f32.gmra.mrb[0].mxu0 %v430
        %v711 = vpop.f32.mrb[0].mxu0
        %v712 = vadd.f32 %v390, %v711
        %v713 = vpop.f32.mrb[0].mxu0
        %714 = vmatprep.mubr.f32.mxu0 0.0
        %715 = vmatmul.mubr.f32.gmra.mrb[0].mxu0 %v433
        %v716 = vpop.f32.mrb[0].mxu0
        %v717 = vadd.f32 %v390, %v716
        %v718 = vpop.f32.mrb[0].mxu0
        %719 = vmatprep.mubr.f32.mxu0 0.0
        %720 = vmatmul.mubr.f32.gmra.mrb[0].mxu0 %v436
        %v721 = vpop.f32.mrb[0].mxu0
        %v722 = vadd.f32 %v390, %v721
        %v723 = vpop.f32.mrb[0].mxu0
        %724 = vmatprep.mubr.f32.mxu0 0.0
        %725 = vmatmul.mubr.f32.gmra.mrb[0].mxu0 %v439
        %v726 = vpop.f32.mrb[0].mxu0
        %v727 = vadd.f32 %v390, %v726
        %v728 = vpop.f32.mrb[0].mxu0
        %729 = vmatprep.mubr.f32.mxu0 0.0
        %730 = vmatmul.mubr.f32.gmra.mrb[0].mxu0 %v442
        %v731 = vpop.f32.mrb[0].mxu0
        %v732 = vadd.f32 %v390, %v731
        %v733 = vpop.f32.mrb[0].mxu0
        %734 = vmatprep.mubr.f32.mxu0 0.0
        %735 = vmatmul.mubr.f32.gmra.mrb[0].mxu0 %v445
        %v736 = vpop.f32.mrb[0].mxu0
        %v737 = vadd.f32 %v390, %v736
        %v738 = vpop.f32.mrb[0].mxu0
        %739 = vmatprep.mubr.f32.mxu0 0.0
        %740 = vmatmul.mubr.f32.gmra.mrb[0].mxu0 %v448
        %v741 = vpop.f32.mrb[0].mxu0
        %v742 = vadd.f32 %v390, %v741
        %v743 = vpop.f32.mrb[0].mxu0
        %744 = vmatprep.mubr.f32.mxu0 0.0
        %745 = vmatmul.mubr.f32.gmra.mrb[0].mxu0 %v451
        %v746 = vpop.f32.mrb[0].mxu0
        %v747 = vadd.f32 %v390, %v746
        %v748 = vpop.f32.mrb[0].mxu0
        %749 = vmatprep.mubr.f32.mxu0 0.0
        %750 = vmatmul.mubr.f32.gmra.mrb[0].mxu0 %v454
        %v751 = vpop.f32.mrb[0].mxu0
        %v752 = vadd.f32 %v390, %v751
        %v753 = vpop.f32.mrb[0].mxu0
        %754 = vmatprep.mubr.f32.mxu0 0.0
        %755 = vmatmul.mubr.f32.gmra.mrb[0].mxu0 %v457
        %v756 = vpop.f32.mrb[0].mxu0
        %v757 = vadd.f32 %v390, %v756
        %v758 = vpop.f32.mrb[0].mxu0
        %759 = vmatprep.mubr.f32.mxu0 0.0
        %760 = vmatmul.mubr.f32.gmra.mrb[0].mxu0 %v460
        %v761 = vpop.f32.mrb[0].mxu0
        %v762 = vadd.f32 %v390, %v761
        %v763 = vpop.f32.mrb[0].mxu0
        %764 = vmatprep.mubr.f32.mxu0 0.0
        %765 = vmatmul.mubr.f32.gmra.mrb[0].mxu0 %v463
        %v766 = vpop.f32.mrb[0].mxu0
        %v767 = vadd.f32 %v390, %v766
        %v768 = vpop.f32.mrb[0].mxu0
        %769 = vmatprep.mubr.f32.mxu0 0.0
        %770 = vmatmul.mubr.f32.gmra.mrb[0].mxu0 %v466
        %v771 = vpop.f32.mrb[0].mxu0
        %v772 = vadd.f32 %v390, %v771
        %v773 = vpop.f32.mrb[0].mxu0
        %774 = vmatprep.mubr.f32.mxu0 0.0
        %775 = vmatmul.mubr.f32.gmra.mrb[0].mxu0 %v469
        %v776 = vpop.f32.mrb[0].mxu0
        %v777 = vadd.f32 %v390, %v776
        %v778 = vpop.f32.mrb[0].mxu0
        %779 = vmatprep.mubr.f32.mxu0 0.0
        %780 = vmatmul.mubr.f32.gmra.mrb[0].mxu0 %v472
        %v781 = vpop.f32.mrb[0].mxu0
        %v782 = vadd.f32 %v390, %v781
        %v783 = vpop.f32.mrb[0].mxu0
        %784 = vmatprep.mubr.f32.mxu0 0.0
        %785 = vmatmul.mubr.f32.gmra.mrb[0].mxu0 %v475
        %v786 = vpop.f32.mrb[0].mxu0
        %v787 = vadd.f32 %v390, %v786
        %v788 = vpop.f32.mrb[0].mxu0
        %789 = vmatprep.mubr.f32.mxu0 0.0
        %790 = vmatmul.mubr.f32.gmra.mrb[0].mxu0 %v478
        %v791 = vpop.f32.mrb[0].mxu0
        %v792 = vadd.f32 %v390, %v791
        %v793 = vpop.f32.mrb[0].mxu0
        %794 = vmatprep.mubr.f32.mxu0 0.0
        %795 = vmatmul.mubr.f32.gmra.mrb[0].mxu0 %v481
        %v796 = vpop.f32.mrb[0].mxu0
        %v797 = vadd.f32 %v390, %v796
        %v798 = vpop.f32.mrb[0].mxu0
        %799 = vmatprep.mubr.f32.mxu0 0.0
        %800 = vmatmul.mubr.f32.gmra.mrb[0].mxu0 %v484
        %v801 = vpop.f32.mrb[0].mxu0
        %v802 = vadd.f32 %v390, %v801
        %v803 = vpop.f32.mrb[0].mxu0
        %804 = vmatprep.mubr.f32.mxu0 0.0
        %805 = vmatmul.mubr.f32.gmra.mrb[0].mxu0 %v487
        %v806 = vpop.f32.mrb[0].mxu0
        %v807 = vadd.f32 %v390, %v806
        %v808 = vpop.f32.mrb[0].mxu0
        %809 = vmatprep.mubr.f32.mxu0 0.0
        %810 = vmatmul.mubr.f32.gmra.mrb[0].mxu0 %v490
        %v811 = vpop.f32.mrb[0].mxu0
        %v812 = vadd.f32 %v390, %v811
        %v813 = vpop.f32.mrb[0].mxu0
        %814 = vmatprep.mubr.f32.mxu0 0.0
        %815 = vmatmul.mubr.f32.gmra.mrb[0].mxu0 %v493
        %v816 = vpop.f32.mrb[0].mxu0
        %v817 = vadd.f32 %v390, %v816
        %v818 = vpop.f32.mrb[0].mxu0
        %819 = vmatprep.mubr.f32.mxu0 0.0
        %820 = vmatmul.mubr.f32.gmra.mrb[0].mxu0 %v496
        %v821 = vpop.f32.mrb[0].mxu0
        %v822 = vadd.f32 %v390, %v821
        %v823 = vpop.f32.mrb[0].mxu0
        %824 = vmatprep.mubr.f32.mxu0 0.0
        %825 = vmatmul.mubr.f32.gmra.mrb[0].mxu0 %v499
        %v826 = vpop.f32.mrb[0].mxu0
        %v827 = vadd.f32 %v390, %v826
        %v828 = vpop.f32.mrb[0].mxu0
        %829 = vmatprep.mubr.f32.mxu0 0.0
        %830 = vmatmul.mubr.f32.gmra.mrb[0].mxu0 %v502
        %v831 = vpop.f32.mrb[0].mxu0
        %v832 = vadd.f32 %v390, %v831
        %v833 = vpop.f32.mrb[0].mxu0
        %834 = vmatprep.mubr.f32.mxu0 0.0
        %835 = vmatmul.mubr.f32.gmra.mrb[0].mxu0 %v505
        %v836 = vpop.f32.mrb[0].mxu0
        %v837 = vadd.f32 %v390, %v836
        %v838 = vpop.f32.mrb[0].mxu0
        %839 = vmatprep.mubr.f32.mxu0 0.0
        %840 = vmatmul.mubr.f32.gmra.mrb[0].mxu0 %v508
        %v841 = vpop.f32.mrb[0].mxu0
        %v842 = vadd.f32 %v390, %v841
        %v843 = vpop.f32.mrb[0].mxu0
        %844 = vmatprep.mubr.f32.mxu0 0.0
        %845 = vmatmul.mubr.f32.gmra.mrb[0].mxu0 %v511
        %v846 = vpop.f32.mrb[0].mxu0
        %v847 = vadd.f32 %v390, %v846
        %v848 = vpop.f32.mrb[0].mxu0
        %849 = vmatprep.mubr.f32.mxu0 0.0
        %850 = vmatmul.mubr.f32.gmra.mrb[0].mxu0 %v514
        %v851 = vpop.f32.mrb[0].mxu0
        %v852 = vadd.f32 %v390, %v851
        %v853 = vpop.f32.mrb[0].mxu0
        %854 = vmatprep.mubr.f32.mxu0 0.0
        %855 = vmatmul.mubr.f32.gmra.mrb[0].mxu0 %v517
        %v856 = vpop.f32.mrb[0].mxu0
        %v857 = vadd.f32 %v390, %v856
        %v858 = vpop.f32.mrb[0].mxu0
        %859 = vmatprep.mubr.f32.mxu0 0.0
        %860 = vmatmul.mubr.f32.gmra.mrb[0].mxu0 %v520
        %v861 = vpop.f32.mrb[0].mxu0
        %v862 = vadd.f32 %v390, %v861
        %v863 = vpop.f32.mrb[0].mxu0
        %864 = vmatprep.mubr.f32.mxu0 0.0
        %865 = vmatmul.mubr.f32.gmra.mrb[0].mxu0 %v523
        %v866 = vpop.f32.mrb[0].mxu0
        %v867 = vadd.f32 %v390, %v866
        %v868 = vpop.f32.mrb[0].mxu0
        %869 = vmatprep.mubr.f32.mxu0 0.0
        %870 = vmatmul.mubr.f32.gmra.mrb[0].mxu0 %v526
        %v871 = vpop.f32.mrb[0].mxu0
        %v872 = vadd.f32 %v390, %v871
        %v873 = vpop.f32.mrb[0].mxu0
        %874 = vmatprep.mubr.f32.mxu0 0.0
        %875 = vmatmul.mubr.f32.gmra.mrb[0].mxu0 %v529
        %v876 = vpop.f32.mrb[0].mxu0
        %v877 = vadd.f32 %v390, %v876
        %v878 = vpop.f32.mrb[0].mxu0
        %879 = vmatprep.mubr.f32.mxu0 0.0
        %880 = vmatmul.mubr.f32.gmra.mrb[0].mxu0 %v532
        %v881 = vpop.f32.mrb[0].mxu0
        %v882 = vadd.f32 %v390, %v881
        %v883 = vpop.f32.mrb[0].mxu0
        %884 = vmatprep.mubr.f32.mxu0 0.0
        %885 = vmatmul.mubr.f32.gmra.mrb[0].mxu0 %v535
        %v886 = vpop.f32.mrb[0].mxu0
        %v887 = vadd.f32 %v390, %v886
        %v888 = vpop.f32.mrb[0].mxu0
        %889 = vmatprep.mubr.f32.mxu0 0.0
        %890 = vmatmul.mubr.f32.gmra.mrb[0].mxu0 %v538
        %v891 = vpop.f32.mrb[0].mxu0
        %v892 = vadd.f32 %v390, %v891
        %v893 = vpop.f32.mrb[0].mxu0
        %894 = vmatprep.mubr.f32.mxu0 0.0
        %895 = vmatmul.mubr.f32.gmra.mrb[0].mxu0 %v541
        %v896 = vpop.f32.mrb[0].mxu0
        %v897 = vadd.f32 %v390, %v896
        %v898 = vpop.f32.mrb[0].mxu0
        %899 = vmatprep.mubr.f32.mxu0 0.0
        %900 = vmatmul.mubr.f32.gmra.mrb[0].mxu0 %v544
        %v901 = vpop.f32.mrb[0].mxu0
        %v902 = vadd.f32 %v390, %v901
        %v903 = vpop.f32.mrb[0].mxu0
        %904 = vmatprep.mubr.f32.mxu0 0.0
        %905 = vmatmul.mubr.f32.gmra.mrb[0].mxu0 %v547
        %v906 = vpop.f32.mrb[0].mxu0
        %v907 = vadd.f32 %v390, %v906
        %v908 = vpop.f32.mrb[0].mxu0
        %909 = vmatprep.mubr.f32.mxu0 0.0
        %910 = vmatmul.mubr.f32.gmra.mrb[0].mxu0 %v550
        %v911 = vpop.f32.mrb[0].mxu0
        %v912 = vadd.f32 %v390, %v911
        %v913 = vpop.f32.mrb[0].mxu0
        %914 = vmatprep.mubr.f32.mxu0 0.0
        %915 = vmatmul.mubr.f32.gmra.mrb[0].mxu0 %v553
        %v916 = vpop.f32.mrb[0].mxu0
        %v917 = vadd.f32 %v390, %v916
        %v918 = vpop.f32.mrb[0].mxu0
        %919 = vmatprep.mubr.f32.mxu0 0.0
        %920 = vmatmul.mubr.f32.gmra.mrb[0].mxu0 %v556
        %v921 = vpop.f32.mrb[0].mxu0
        %v922 = vadd.f32 %v390, %v921
        %v923 = vpop.f32.mrb[0].mxu0
        %924 = vmatprep.mubr.f32.mxu0 0.0
        %925 = vmatmul.mubr.f32.gmra.mrb[0].mxu0 %v559
        %v926 = vpop.f32.mrb[0].mxu0
        %v927 = vadd.f32 %v390, %v926
        %v928 = vpop.f32.mrb[0].mxu0
        %929 = vmatprep.mubr.f32.mxu0 0.0
        %930 = vmatmul.mubr.f32.gmra.mrb[0].mxu0 %v562
        %v931 = vpop.f32.mrb[0].mxu0
        %v932 = vadd.f32 %v390, %v931
        %v933 = vpop.f32.mrb[0].mxu0
        %934 = vmatprep.mubr.f32.mxu0 0.0
        %935 = vmatmul.mubr.f32.gmra.mrb[0].mxu0 %v565
        %v936 = vpop.f32.mrb[0].mxu0
        %v937 = vadd.f32 %v390, %v936
        %v938 = vpop.f32.mrb[0].mxu0
        %939 = vmatprep.mubr.f32.mxu0 0.0
        %940 = vmatmul.mubr.f32.gmra.mrb[0].mxu0 %v568
        %v941 = vpop.f32.mrb[0].mxu0
        %v942 = vadd.f32 %v390, %v941
        %v943 = vpop.f32.mrb[0].mxu0
        %944 = vmatprep.mubr.f32.mxu0 0.0
        %945 = vmatmul.mubr.f32.gmra.mrb[0].mxu0 %v571
        %v946 = vpop.f32.mrb[0].mxu0
        %v947 = vadd.f32 %v390, %v946
        %v948 = vpop.f32.mrb[0].mxu0
        %949 = vmatprep.mubr.f32.mxu0 0.0
        %950 = vmatmul.mubr.f32.gmra.mrb[0].mxu0 %v574
        %v951 = vpop.f32.mrb[0].mxu0
        %v952 = vadd.f32 %v390, %v951
        %v953 = vpop.f32.mrb[0].mxu0
        %954 = vmatprep.mubr.f32.mxu0 0.0
        %955 = vmatmul.mubr.f32.gmra.mrb[0].mxu0 %v577
        %v956 = vpop.f32.mrb[0].mxu0
        %v957 = vadd.f32 %v390, %v956
        %v958 = vpop.f32.mrb[0].mxu0
        %959 = vmatprep.mubr.f32.mxu0 0.0
        %960 = vmatmul.mubr.f32.gmra.mrb[0].mxu0 %v580
        %v961 = vpop.f32.mrb[0].mxu0
        %v962 = vadd.f32 %v390, %v961
        %v963 = vpop.f32.mrb[0].mxu0
        %964 = vmatprep.mubr.f32.mxu0 0.0
        %965 = vmatmul.mubr.f32.gmra.mrb[0].mxu0 %v583
        %v966 = vpop.f32.mrb[0].mxu0
        %v967 = vadd.f32 %v390, %v966
        %v968 = vpop.f32.mrb[0].mxu0
        %969 = vdwg.mxu0
        %v970 = vmax.f32 %v652, 0.0
        %v971 = vmax.f32 %v657, 0.0
        %v972 = vmax.f32 %v662, 0.0
        %v973 = vmax.f32 %v667, 0.0
        %v974 = vmax.f32 %v672, 0.0
        %v975 = vmax.f32 %v677, 0.0
        %v976 = vmax.f32 %v682, 0.0
        %v977 = vmax.f32 %v687, 0.0
        %v978 = vmax.f32 %v692, 0.0
        %v979 = vmax.f32 %v697, 0.0
        %v980 = vmax.f32 %v702, 0.0
        %v981 = vmax.f32 %v707, 0.0
        %v982 = vmax.f32 %v712, 0.0
        %v983 = vmax.f32 %v717, 0.0
        %v984 = vmax.f32 %v722, 0.0
        %v985 = vmax.f32 %v727, 0.0
        %v986 = vmax.f32 %v732, 0.0
        %v987 = vmax.f32 %v737, 0.0
        %v988 = vmax.f32 %v742, 0.0
        %v989 = vmax.f32 %v747, 0.0
        %v990 = vmax.f32 %v752, 0.0
        %v991 = vmax.f32 %v757, 0.0
        %v992 = vmax.f32 %v762, 0.0
        %v993 = vmax.f32 %v767, 0.0
        %v994 = vmax.f32 %v772, 0.0
        %v995 = vmax.f32 %v777, 0.0
        %v996 = vmax.f32 %v782, 0.0
        %v997 = vmax.f32 %v787, 0.0
        %v998 = vmax.f32 %v792, 0.0
        %v999 = vmax.f32 %v797, 0.0
        %v1000 = vmax.f32 %v802, 0.0
        %v1001 = vmax.f32 %v807, 0.0
        %v1002 = vmax.f32 %v812, 0.0
        %v1003 = vmax.f32 %v817, 0.0
        %v1004 = vmax.f32 %v822, 0.0
        %v1005 = vmax.f32 %v827, 0.0
        %v1006 = vmax.f32 %v832, 0.0
        %v1007 = vmax.f32 %v837, 0.0
        %v1008 = vmax.f32 %v842, 0.0
        %v1009 = vmax.f32 %v847, 0.0
        %v1010 = vmax.f32 %v852, 0.0
        %v1011 = vmax.f32 %v857, 0.0
        %v1012 = vmax.f32 %v862, 0.0
        %v1013 = vmax.f32 %v867, 0.0
        %v1014 = vmax.f32 %v872, 0.0
        %v1015 = vmax.f32 %v877, 0.0
        %v1016 = vmax.f32 %v882, 0.0
        %v1017 = vmax.f32 %v887, 0.0
        %v1018 = vmax.f32 %v892, 0.0
        %v1019 = vmax.f32 %v897, 0.0
        %v1020 = vmax.f32 %v902, 0.0
        %v1021 = vmax.f32 %v907, 0.0
        %v1022 = vmax.f32 %v912, 0.0
        %v1023 = vmax.f32 %v917, 0.0
        %v1024 = vmax.f32 %v922, 0.0
        %v1025 = vmax.f32 %v927, 0.0
        %v1026 = vmax.f32 %v932, 0.0
        %v1027 = vmax.f32 %v937, 0.0
        %v1028 = vmax.f32 %v942, 0.0
        %v1029 = vmax.f32 %v947, 0.0
        %v1030 = vmax.f32 %v952, 0.0
        %v1031 = vmax.f32 %v957, 0.0
        %v1032 = vmax.f32 %v962, 0.0
        %v1033 = vmax.f32 %v967, 0.0
        %v1034 = vld [vmem:[%s3] sm:$0xff]
        %v1035 = vld [vmem:[%s3 + $0x8] sm:$0xff]
        %v1036 = vld [vmem:[%s3 + $0x10] sm:$0xff]
        %v1037 = vld [vmem:[%s3 + $0x18] sm:$0xff]
        %v1038 = vld [vmem:[%s4] sm:$0x1]
        %v1040 = vlaneseq
        %v1041 = vshrl.u32 %v1040, 7
        %v1042 = vsub.s32 0, %v1041
        %v1043 = vrot.slane %v1038, %v1042
        %v1046 = vsel %vm392, %v970, 0
        %v1049 = vsel %vm392, %v971, 0
        %v1052 = vsel %vm392, %v972, 0
        %v1055 = vsel %vm392, %v973, 0
        %v1058 = vsel %vm392, %v974, 0
        %v1061 = vsel %vm392, %v975, 0
        %v1064 = vsel %vm392, %v976, 0
        %v1067 = vsel %vm392, %v977, 0
        %v1070 = vsel %vm392, %v978, 0
        %v1073 = vsel %vm392, %v979, 0
        %v1076 = vsel %vm392, %v980, 0
        %v1079 = vsel %vm392, %v981, 0
        %v1082 = vsel %vm392, %v982, 0
        %v1085 = vsel %vm392, %v983, 0
        %v1088 = vsel %vm392, %v984, 0
        %v1091 = vsel %vm392, %v985, 0
        %v1094 = vsel %vm392, %v986, 0
        %v1097 = vsel %vm392, %v987, 0
        %v1100 = vsel %vm392, %v988, 0
        %v1103 = vsel %vm392, %v989, 0
        %v1106 = vsel %vm392, %v990, 0
        %v1109 = vsel %vm392, %v991, 0
        %v1112 = vsel %vm392, %v992, 0
        %v1115 = vsel %vm392, %v993, 0
        %v1118 = vsel %vm392, %v994, 0
        %v1121 = vsel %vm392, %v995, 0
        %v1124 = vsel %vm392, %v996, 0
        %v1127 = vsel %vm392, %v997, 0
        %v1130 = vsel %vm392, %v998, 0
        %v1133 = vsel %vm392, %v999, 0
        %v1136 = vsel %vm392, %v1000, 0
        %v1139 = vsel %vm392, %v1001, 0
        %v1142 = vsel %vm392, %v1002, 0
        %v1145 = vsel %vm392, %v1003, 0
        %v1148 = vsel %vm392, %v1004, 0
        %v1151 = vsel %vm392, %v1005, 0
        %v1154 = vsel %vm392, %v1006, 0
        %v1157 = vsel %vm392, %v1007, 0
        %v1160 = vsel %vm392, %v1008, 0
        %v1163 = vsel %vm392, %v1009, 0
        %v1166 = vsel %vm392, %v1010, 0
        %v1169 = vsel %vm392, %v1011, 0
        %v1172 = vsel %vm392, %v1012, 0
        %v1175 = vsel %vm392, %v1013, 0
        %v1178 = vsel %vm392, %v1014, 0
        %v1181 = vsel %vm392, %v1015, 0
        %v1184 = vsel %vm392, %v1016, 0
        %v1187 = vsel %vm392, %v1017, 0
        %v1190 = vsel %vm392, %v1018, 0
        %v1193 = vsel %vm392, %v1019, 0
        %v1196 = vsel %vm392, %v1020, 0
        %v1199 = vsel %vm392, %v1021, 0
        %v1202 = vsel %vm392, %v1022, 0
        %v1205 = vsel %vm392, %v1023, 0
        %v1208 = vsel %vm392, %v1024, 0
        %v1211 = vsel %vm392, %v1025, 0
        %v1214 = vsel %vm392, %v1026, 0
        %v1217 = vsel %vm392, %v1027, 0
        %v1220 = vsel %vm392, %v1028, 0
        %v1223 = vsel %vm392, %v1029, 0
        %v1226 = vsel %vm392, %v1030, 0
        %v1229 = vsel %vm392, %v1031, 0
        %v1232 = vsel %vm392, %v1032, 0
        %v1235 = vsel %vm392, %v1033, 0
        %1237 = vmatprep.subr.mxu0 0.0
        %1238 = vmatpush1.msra.mxu0 %v1034
        %1239 = vmatprep.subr.mxu0 0.0
        %1240 = vmatpush1.msra.mxu0 %v1035
        %1241 = vmatprep.subr.mxu0 0.0
        %1242 = vmatpush1.msra.mxu0 %v1036
        %1243 = vmatprep.subr.mxu0 0.0
        %1244 = vmatpush1.msra.mxu0 %v1037
        %1245 = vmatprep.subr.mxu0 0.0
        %1246 = vmatpush1.msra.mxu0 0.0
        %1247 = vmatprep.subr.mxu0 0.0
        %1248 = vmatpush1.msra.mxu0 0.0
        %1249 = vmatprep.subr.mxu0 0.0
        %1250 = vmatpush1.msra.mxu0 0.0
        %1251 = vmatprep.subr.mxu0 0.0
        %1252 = vmatpush1.msra.mxu0 0.0
        %1253 = vmatprep.subr.mxu0 0.0
        %1254 = vmatpush1.msra.mxu0 0.0
        %1255 = vmatprep.subr.mxu0 0.0
        %1256 = vmatpush1.msra.mxu0 0.0
        %1257 = vmatprep.subr.mxu0 0.0
        %1258 = vmatpush1.msra.mxu0 0.0
        %1259 = vmatprep.subr.mxu0 0.0
        %1260 = vmatpush1.msra.mxu0 0.0
        %1261 = vmatprep.subr.mxu0 0.0
        %1262 = vmatpush1.msra.mxu0 0.0
        %1263 = vmatprep.subr.mxu0 0.0
        %1264 = vmatpush1.msra.mxu0 0.0
        %1265 = vmatprep.subr.mxu0 0.0
        %1266 = vmatpush1.msra.mxu0 0.0
        %1267 = vmatprep.subr.mxu0 0.0
        %1268 = vmatpush1.msra.mxu0 0.0
        %1269 = vmatprep.subr.mxu0 0.0
        %1270 = vmatpush1.msra.mxu0 0.0
        %1271 = vmatprep.subr.mxu0 0.0
        %1272 = vmatpush1.msra.mxu0 0.0
        %1273 = vmatprep.subr.mxu0 0.0
        %1274 = vmatpush1.msra.mxu0 0.0
        %1275 = vmatprep.subr.mxu0 0.0
        %1276 = vmatpush1.msra.mxu0 0.0
        %1277 = vmatprep.subr.mxu0 0.0
        %1278 = vmatpush1.msra.mxu0 0.0
        %1279 = vmatprep.subr.mxu0 0.0
        %1280 = vmatpush1.msra.mxu0 0.0
        %1281 = vmatprep.subr.mxu0 0.0
        %1282 = vmatpush1.msra.mxu0 0.0
        %1283 = vmatprep.subr.mxu0 0.0
        %1284 = vmatpush1.msra.mxu0 0.0
        %1285 = vmatprep.subr.mxu0 0.0
        %1286 = vmatpush1.msra.mxu0 0.0
        %1287 = vmatprep.subr.mxu0 0.0
        %1288 = vmatpush1.msra.mxu0 0.0
        %1289 = vmatprep.subr.mxu0 0.0
        %1290 = vmatpush1.msra.mxu0 0.0
        %1291 = vmatprep.subr.mxu0 0.0
        %1292 = vmatpush1.msra.mxu0 0.0
        %1293 = vmatprep.subr.mxu0 0.0
        %1294 = vmatpush1.msra.mxu0 0.0
        %1295 = vmatprep.subr.mxu0 0.0
        %1296 = vmatpush1.msra.mxu0 0.0
        %1297 = vmatprep.subr.mxu0 0.0
        %1298 = vmatpush1.msra.mxu0 0.0
        %1299 = vmatprep.subr.mxu0 0.0
        %1300 = vmatpush1.msra.mxu0 0.0
        %1301 = vmatprep.mubr.f32.mxu0 0.0
        %1302 = vmatmul.mubr.f32.gmra.mrb[0].mxu0 %v1046
        %v1303 = vpop.f32.mrb[0].mxu0
        %v1304 = vadd.f32 %v1043, %v1303
        %v1305 = vpop.f32.mrb[0].mxu0
        %1306 = vmatprep.mubr.f32.mxu0 0.0
        %1307 = vmatmul.mubr.f32.gmra.mrb[0].mxu0 %v1049
        %v1308 = vpop.f32.mrb[0].mxu0
        %v1309 = vadd.f32 %v1043, %v1308
        %v1310 = vpop.f32.mrb[0].mxu0
        %1311 = vmatprep.mubr.f32.mxu0 0.0
        %1312 = vmatmul.mubr.f32.gmra.mrb[0].mxu0 %v1052
        %v1313 = vpop.f32.mrb[0].mxu0
        %v1314 = vadd.f32 %v1043, %v1313
        %v1315 = vpop.f32.mrb[0].mxu0
        %1316 = vmatprep.mubr.f32.mxu0 0.0
        %1317 = vmatmul.mubr.f32.gmra.mrb[0].mxu0 %v1055
        %v1318 = vpop.f32.mrb[0].mxu0
        %v1319 = vadd.f32 %v1043, %v1318
        %v1320 = vpop.f32.mrb[0].mxu0
        %1321 = vmatprep.mubr.f32.mxu0 0.0
        %1322 = vmatmul.mubr.f32.gmra.mrb[0].mxu0 %v1058
        %v1323 = vpop.f32.mrb[0].mxu0
        %v1324 = vadd.f32 %v1043, %v1323
        %v1325 = vpop.f32.mrb[0].mxu0
        %1326 = vmatprep.mubr.f32.mxu0 0.0
        %1327 = vmatmul.mubr.f32.gmra.mrb[0].mxu0 %v1061
        %v1328 = vpop.f32.mrb[0].mxu0
        %v1329 = vadd.f32 %v1043, %v1328
        %v1330 = vpop.f32.mrb[0].mxu0
        %1331 = vmatprep.mubr.f32.mxu0 0.0
        %1332 = vmatmul.mubr.f32.gmra.mrb[0].mxu0 %v1064
        %v1333 = vpop.f32.mrb[0].mxu0
        %v1334 = vadd.f32 %v1043, %v1333
        %v1335 = vpop.f32.mrb[0].mxu0
        %1336 = vmatprep.mubr.f32.mxu0 0.0
        %1337 = vmatmul.mubr.f32.gmra.mrb[0].mxu0 %v1067
        %v1338 = vpop.f32.mrb[0].mxu0
        %v1339 = vadd.f32 %v1043, %v1338
        %v1340 = vpop.f32.mrb[0].mxu0
        %1341 = vmatprep.mubr.f32.mxu0 0.0
        %1342 = vmatmul.mubr.f32.gmra.mrb[0].mxu0 %v1070
        %v1343 = vpop.f32.mrb[0].mxu0
        %v1344 = vadd.f32 %v1043, %v1343
        %v1345 = vpop.f32.mrb[0].mxu0
        %1346 = vmatprep.mubr.f32.mxu0 0.0
        %1347 = vmatmul.mubr.f32.gmra.mrb[0].mxu0 %v1073
        %v1348 = vpop.f32.mrb[0].mxu0
        %v1349 = vadd.f32 %v1043, %v1348
        %v1350 = vpop.f32.mrb[0].mxu0
        %1351 = vmatprep.mubr.f32.mxu0 0.0
        %1352 = vmatmul.mubr.f32.gmra.mrb[0].mxu0 %v1076
        %v1353 = vpop.f32.mrb[0].mxu0
        %v1354 = vadd.f32 %v1043, %v1353
        %v1355 = vpop.f32.mrb[0].mxu0
        %1356 = vmatprep.mubr.f32.mxu0 0.0
        %1357 = vmatmul.mubr.f32.gmra.mrb[0].mxu0 %v1079
        %v1358 = vpop.f32.mrb[0].mxu0
        %v1359 = vadd.f32 %v1043, %v1358
        %v1360 = vpop.f32.mrb[0].mxu0
        %1361 = vmatprep.mubr.f32.mxu0 0.0
        %1362 = vmatmul.mubr.f32.gmra.mrb[0].mxu0 %v1082
        %v1363 = vpop.f32.mrb[0].mxu0
        %v1364 = vadd.f32 %v1043, %v1363
        %v1365 = vpop.f32.mrb[0].mxu0
        %1366 = vmatprep.mubr.f32.mxu0 0.0
        %1367 = vmatmul.mubr.f32.gmra.mrb[0].mxu0 %v1085
        %v1368 = vpop.f32.mrb[0].mxu0
        %v1369 = vadd.f32 %v1043, %v1368
        %v1370 = vpop.f32.mrb[0].mxu0
        %1371 = vmatprep.mubr.f32.mxu0 0.0
        %1372 = vmatmul.mubr.f32.gmra.mrb[0].mxu0 %v1088
        %v1373 = vpop.f32.mrb[0].mxu0
        %v1374 = vadd.f32 %v1043, %v1373
        %v1375 = vpop.f32.mrb[0].mxu0
        %1376 = vmatprep.mubr.f32.mxu0 0.0
        %1377 = vmatmul.mubr.f32.gmra.mrb[0].mxu0 %v1091
        %v1378 = vpop.f32.mrb[0].mxu0
        %v1379 = vadd.f32 %v1043, %v1378
        %v1380 = vpop.f32.mrb[0].mxu0
        %1381 = vmatprep.mubr.f32.mxu0 0.0
        %1382 = vmatmul.mubr.f32.gmra.mrb[0].mxu0 %v1094
        %v1383 = vpop.f32.mrb[0].mxu0
        %v1384 = vadd.f32 %v1043, %v1383
        %v1385 = vpop.f32.mrb[0].mxu0
        %1386 = vmatprep.mubr.f32.mxu0 0.0
        %1387 = vmatmul.mubr.f32.gmra.mrb[0].mxu0 %v1097
        %v1388 = vpop.f32.mrb[0].mxu0
        %v1389 = vadd.f32 %v1043, %v1388
        %v1390 = vpop.f32.mrb[0].mxu0
        %1391 = vmatprep.mubr.f32.mxu0 0.0
        %1392 = vmatmul.mubr.f32.gmra.mrb[0].mxu0 %v1100
        %v1393 = vpop.f32.mrb[0].mxu0
        %v1394 = vadd.f32 %v1043, %v1393
        %v1395 = vpop.f32.mrb[0].mxu0
        %1396 = vmatprep.mubr.f32.mxu0 0.0
        %1397 = vmatmul.mubr.f32.gmra.mrb[0].mxu0 %v1103
        %v1398 = vpop.f32.mrb[0].mxu0
        %v1399 = vadd.f32 %v1043, %v1398
        %v1400 = vpop.f32.mrb[0].mxu0
        %1401 = vmatprep.mubr.f32.mxu0 0.0
        %1402 = vmatmul.mubr.f32.gmra.mrb[0].mxu0 %v1106
        %v1403 = vpop.f32.mrb[0].mxu0
        %v1404 = vadd.f32 %v1043, %v1403
        %v1405 = vpop.f32.mrb[0].mxu0
        %1406 = vmatprep.mubr.f32.mxu0 0.0
        %1407 = vmatmul.mubr.f32.gmra.mrb[0].mxu0 %v1109
        %v1408 = vpop.f32.mrb[0].mxu0
        %v1409 = vadd.f32 %v1043, %v1408
        %v1410 = vpop.f32.mrb[0].mxu0
        %1411 = vmatprep.mubr.f32.mxu0 0.0
        %1412 = vmatmul.mubr.f32.gmra.mrb[0].mxu0 %v1112
        %v1413 = vpop.f32.mrb[0].mxu0
        %v1414 = vadd.f32 %v1043, %v1413
        %v1415 = vpop.f32.mrb[0].mxu0
        %1416 = vmatprep.mubr.f32.mxu0 0.0
        %1417 = vmatmul.mubr.f32.gmra.mrb[0].mxu0 %v1115
        %v1418 = vpop.f32.mrb[0].mxu0
        %v1419 = vadd.f32 %v1043, %v1418
        %v1420 = vpop.f32.mrb[0].mxu0
        %1421 = vmatprep.mubr.f32.mxu0 0.0
        %1422 = vmatmul.mubr.f32.gmra.mrb[0].mxu0 %v1118
        %v1423 = vpop.f32.mrb[0].mxu0
        %v1424 = vadd.f32 %v1043, %v1423
        %v1425 = vpop.f32.mrb[0].mxu0
        %1426 = vmatprep.mubr.f32.mxu0 0.0
        %1427 = vmatmul.mubr.f32.gmra.mrb[0].mxu0 %v1121
        %v1428 = vpop.f32.mrb[0].mxu0
        %v1429 = vadd.f32 %v1043, %v1428
        %v1430 = vpop.f32.mrb[0].mxu0
        %1431 = vmatprep.mubr.f32.mxu0 0.0
        %1432 = vmatmul.mubr.f32.gmra.mrb[0].mxu0 %v1124
        %v1433 = vpop.f32.mrb[0].mxu0
        %v1434 = vadd.f32 %v1043, %v1433
        %v1435 = vpop.f32.mrb[0].mxu0
        %1436 = vmatprep.mubr.f32.mxu0 0.0
        %1437 = vmatmul.mubr.f32.gmra.mrb[0].mxu0 %v1127
        %v1438 = vpop.f32.mrb[0].mxu0
        %v1439 = vadd.f32 %v1043, %v1438
        %v1440 = vpop.f32.mrb[0].mxu0
        %1441 = vmatprep.mubr.f32.mxu0 0.0
        %1442 = vmatmul.mubr.f32.gmra.mrb[0].mxu0 %v1130
        %v1443 = vpop.f32.mrb[0].mxu0
        %v1444 = vadd.f32 %v1043, %v1443
        %v1445 = vpop.f32.mrb[0].mxu0
        %1446 = vmatprep.mubr.f32.mxu0 0.0
        %1447 = vmatmul.mubr.f32.gmra.mrb[0].mxu0 %v1133
        %v1448 = vpop.f32.mrb[0].mxu0
        %v1449 = vadd.f32 %v1043, %v1448
        %v1450 = vpop.f32.mrb[0].mxu0
        %1451 = vmatprep.mubr.f32.mxu0 0.0
        %1452 = vmatmul.mubr.f32.gmra.mrb[0].mxu0 %v1136
        %v1453 = vpop.f32.mrb[0].mxu0
        %v1454 = vadd.f32 %v1043, %v1453
        %v1455 = vpop.f32.mrb[0].mxu0
        %1456 = vmatprep.mubr.f32.mxu0 0.0
        %1457 = vmatmul.mubr.f32.gmra.mrb[0].mxu0 %v1139
        %v1458 = vpop.f32.mrb[0].mxu0
        %v1459 = vadd.f32 %v1043, %v1458
        %v1460 = vpop.f32.mrb[0].mxu0
        %1461 = vmatprep.mubr.f32.mxu0 0.0
        %1462 = vmatmul.mubr.f32.gmra.mrb[0].mxu0 %v1142
        %v1463 = vpop.f32.mrb[0].mxu0
        %v1464 = vadd.f32 %v1043, %v1463
        %v1465 = vpop.f32.mrb[0].mxu0
        %1466 = vmatprep.mubr.f32.mxu0 0.0
        %1467 = vmatmul.mubr.f32.gmra.mrb[0].mxu0 %v1145
        %v1468 = vpop.f32.mrb[0].mxu0
        %v1469 = vadd.f32 %v1043, %v1468
        %v1470 = vpop.f32.mrb[0].mxu0
        %1471 = vmatprep.mubr.f32.mxu0 0.0
        %1472 = vmatmul.mubr.f32.gmra.mrb[0].mxu0 %v1148
        %v1473 = vpop.f32.mrb[0].mxu0
        %v1474 = vadd.f32 %v1043, %v1473
        %v1475 = vpop.f32.mrb[0].mxu0
        %1476 = vmatprep.mubr.f32.mxu0 0.0
        %1477 = vmatmul.mubr.f32.gmra.mrb[0].mxu0 %v1151
        %v1478 = vpop.f32.mrb[0].mxu0
        %v1479 = vadd.f32 %v1043, %v1478
        %v1480 = vpop.f32.mrb[0].mxu0
        %1481 = vmatprep.mubr.f32.mxu0 0.0
        %1482 = vmatmul.mubr.f32.gmra.mrb[0].mxu0 %v1154
        %v1483 = vpop.f32.mrb[0].mxu0
        %v1484 = vadd.f32 %v1043, %v1483
        %v1485 = vpop.f32.mrb[0].mxu0
        %1486 = vmatprep.mubr.f32.mxu0 0.0
        %1487 = vmatmul.mubr.f32.gmra.mrb[0].mxu0 %v1157
        %v1488 = vpop.f32.mrb[0].mxu0
        %v1489 = vadd.f32 %v1043, %v1488
        %v1490 = vpop.f32.mrb[0].mxu0
        %1491 = vmatprep.mubr.f32.mxu0 0.0
        %1492 = vmatmul.mubr.f32.gmra.mrb[0].mxu0 %v1160
        %v1493 = vpop.f32.mrb[0].mxu0
        %v1494 = vadd.f32 %v1043, %v1493
        %v1495 = vpop.f32.mrb[0].mxu0
        %1496 = vmatprep.mubr.f32.mxu0 0.0
        %1497 = vmatmul.mubr.f32.gmra.mrb[0].mxu0 %v1163
        %v1498 = vpop.f32.mrb[0].mxu0
        %v1499 = vadd.f32 %v1043, %v1498
        %v1500 = vpop.f32.mrb[0].mxu0
        %1501 = vmatprep.mubr.f32.mxu0 0.0
        %1502 = vmatmul.mubr.f32.gmra.mrb[0].mxu0 %v1166
        %v1503 = vpop.f32.mrb[0].mxu0
        %v1504 = vadd.f32 %v1043, %v1503
        %v1505 = vpop.f32.mrb[0].mxu0
        %1506 = vmatprep.mubr.f32.mxu0 0.0
        %1507 = vmatmul.mubr.f32.gmra.mrb[0].mxu0 %v1169
        %v1508 = vpop.f32.mrb[0].mxu0
        %v1509 = vadd.f32 %v1043, %v1508
        %v1510 = vpop.f32.mrb[0].mxu0
        %1511 = vmatprep.mubr.f32.mxu0 0.0
        %1512 = vmatmul.mubr.f32.gmra.mrb[0].mxu0 %v1172
        %v1513 = vpop.f32.mrb[0].mxu0
        %v1514 = vadd.f32 %v1043, %v1513
        %v1515 = vpop.f32.mrb[0].mxu0
        %1516 = vmatprep.mubr.f32.mxu0 0.0
        %1517 = vmatmul.mubr.f32.gmra.mrb[0].mxu0 %v1175
        %v1518 = vpop.f32.mrb[0].mxu0
        %v1519 = vadd.f32 %v1043, %v1518
        %v1520 = vpop.f32.mrb[0].mxu0
        %1521 = vmatprep.mubr.f32.mxu0 0.0
        %1522 = vmatmul.mubr.f32.gmra.mrb[0].mxu0 %v1178
        %v1523 = vpop.f32.mrb[0].mxu0
        %v1524 = vadd.f32 %v1043, %v1523
        %v1525 = vpop.f32.mrb[0].mxu0
        %1526 = vmatprep.mubr.f32.mxu0 0.0
        %1527 = vmatmul.mubr.f32.gmra.mrb[0].mxu0 %v1181
        %v1528 = vpop.f32.mrb[0].mxu0
        %v1529 = vadd.f32 %v1043, %v1528
        %v1530 = vpop.f32.mrb[0].mxu0
        %1531 = vmatprep.mubr.f32.mxu0 0.0
        %1532 = vmatmul.mubr.f32.gmra.mrb[0].mxu0 %v1184
        %v1533 = vpop.f32.mrb[0].mxu0
        %v1534 = vadd.f32 %v1043, %v1533
        %v1535 = vpop.f32.mrb[0].mxu0
        %1536 = vmatprep.mubr.f32.mxu0 0.0
        %1537 = vmatmul.mubr.f32.gmra.mrb[0].mxu0 %v1187
        %v1538 = vpop.f32.mrb[0].mxu0
        %v1539 = vadd.f32 %v1043, %v1538
        %v1540 = vpop.f32.mrb[0].mxu0
        %1541 = vmatprep.mubr.f32.mxu0 0.0
        %1542 = vmatmul.mubr.f32.gmra.mrb[0].mxu0 %v1190
        %v1543 = vpop.f32.mrb[0].mxu0
        %v1544 = vadd.f32 %v1043, %v1543
        %v1545 = vpop.f32.mrb[0].mxu0
        %1546 = vmatprep.mubr.f32.mxu0 0.0
        %1547 = vmatmul.mubr.f32.gmra.mrb[0].mxu0 %v1193
        %v1548 = vpop.f32.mrb[0].mxu0
        %v1549 = vadd.f32 %v1043, %v1548
        %v1550 = vpop.f32.mrb[0].mxu0
        %1551 = vmatprep.mubr.f32.mxu0 0.0
        %1552 = vmatmul.mubr.f32.gmra.mrb[0].mxu0 %v1196
        %v1553 = vpop.f32.mrb[0].mxu0
        %v1554 = vadd.f32 %v1043, %v1553
        %v1555 = vpop.f32.mrb[0].mxu0
        %1556 = vmatprep.mubr.f32.mxu0 0.0
        %1557 = vmatmul.mubr.f32.gmra.mrb[0].mxu0 %v1199
        %v1558 = vpop.f32.mrb[0].mxu0
        %v1559 = vadd.f32 %v1043, %v1558
        %v1560 = vpop.f32.mrb[0].mxu0
        %1561 = vmatprep.mubr.f32.mxu0 0.0
        %1562 = vmatmul.mubr.f32.gmra.mrb[0].mxu0 %v1202
        %v1563 = vpop.f32.mrb[0].mxu0
        %v1564 = vadd.f32 %v1043, %v1563
        %v1565 = vpop.f32.mrb[0].mxu0
        %1566 = vmatprep.mubr.f32.mxu0 0.0
        %1567 = vmatmul.mubr.f32.gmra.mrb[0].mxu0 %v1205
        %v1568 = vpop.f32.mrb[0].mxu0
        %v1569 = vadd.f32 %v1043, %v1568
        %v1570 = vpop.f32.mrb[0].mxu0
        %1571 = vmatprep.mubr.f32.mxu0 0.0
        %1572 = vmatmul.mubr.f32.gmra.mrb[0].mxu0 %v1208
        %v1573 = vpop.f32.mrb[0].mxu0
        %v1574 = vadd.f32 %v1043, %v1573
        %v1575 = vpop.f32.mrb[0].mxu0
        %1576 = vmatprep.mubr.f32.mxu0 0.0
        %1577 = vmatmul.mubr.f32.gmra.mrb[0].mxu0 %v1211
        %v1578 = vpop.f32.mrb[0].mxu0
        %v1579 = vadd.f32 %v1043, %v1578
        %v1580 = vpop.f32.mrb[0].mxu0
        %1581 = vmatprep.mubr.f32.mxu0 0.0
        %1582 = vmatmul.mubr.f32.gmra.mrb[0].mxu0 %v1214
        %v1583 = vpop.f32.mrb[0].mxu0
        %v1584 = vadd.f32 %v1043, %v1583
        %v1585 = vpop.f32.mrb[0].mxu0
        %1586 = vmatprep.mubr.f32.mxu0 0.0
        %1587 = vmatmul.mubr.f32.gmra.mrb[0].mxu0 %v1217
        %v1588 = vpop.f32.mrb[0].mxu0
        %v1589 = vadd.f32 %v1043, %v1588
        %v1590 = vpop.f32.mrb[0].mxu0
        %1591 = vmatprep.mubr.f32.mxu0 0.0
        %1592 = vmatmul.mubr.f32.gmra.mrb[0].mxu0 %v1220
        %v1593 = vpop.f32.mrb[0].mxu0
        %v1594 = vadd.f32 %v1043, %v1593
        %v1595 = vpop.f32.mrb[0].mxu0
        %1596 = vmatprep.mubr.f32.mxu0 0.0
        %1597 = vmatmul.mubr.f32.gmra.mrb[0].mxu0 %v1223
        %v1598 = vpop.f32.mrb[0].mxu0
        %v1599 = vadd.f32 %v1043, %v1598
        %v1600 = vpop.f32.mrb[0].mxu0
        %1601 = vmatprep.mubr.f32.mxu0 0.0
        %1602 = vmatmul.mubr.f32.gmra.mrb[0].mxu0 %v1226
        %v1603 = vpop.f32.mrb[0].mxu0
        %v1604 = vadd.f32 %v1043, %v1603
        %v1605 = vpop.f32.mrb[0].mxu0
        %1606 = vmatprep.mubr.f32.mxu0 0.0
        %1607 = vmatmul.mubr.f32.gmra.mrb[0].mxu0 %v1229
        %v1608 = vpop.f32.mrb[0].mxu0
        %v1609 = vadd.f32 %v1043, %v1608
        %v1610 = vpop.f32.mrb[0].mxu0
        %1611 = vmatprep.mubr.f32.mxu0 0.0
        %1612 = vmatmul.mubr.f32.gmra.mrb[0].mxu0 %v1232
        %v1613 = vpop.f32.mrb[0].mxu0
        %v1614 = vadd.f32 %v1043, %v1613
        %v1615 = vpop.f32.mrb[0].mxu0
        %1616 = vmatprep.mubr.f32.mxu0 0.0
        %1617 = vmatmul.mubr.f32.gmra.mrb[0].mxu0 %v1235
        %v1618 = vpop.f32.mrb[0].mxu0
        %v1619 = vadd.f32 %v1043, %v1618
        %v1620 = vpop.f32.mrb[0].mxu0
        %1621 = vdwg.mxu0
        %v1622 = vld [vmem:[%s5] sm:$0xff]
        %v1623 = vld [vmem:[%s5 + $0x8] sm:$0xff]
        %v1624 = vld [vmem:[%s5 + $0x10] sm:$0xff]
        %v1625 = vld [vmem:[%s5 + $0x18] sm:$0xff]
        %v1627 = vsel %vm392, %v253, 0
        %v1630 = vsel %vm392, %v254, 0
        %v1633 = vsel %vm392, %v255, 0
        %v1636 = vsel %vm392, %v256, 0
        %v1639 = vsel %vm392, %v257, 0
        %v1642 = vsel %vm392, %v258, 0
        %v1645 = vsel %vm392, %v259, 0
        %v1648 = vsel %vm392, %v260, 0
        %v1651 = vsel %vm392, %v261, 0
        %v1654 = vsel %vm392, %v262, 0
        %v1657 = vsel %vm392, %v263, 0
        %v1660 = vsel %vm392, %v264, 0
        %v1663 = vsel %vm392, %v265, 0
        %v1666 = vsel %vm392, %v266, 0
        %v1669 = vsel %vm392, %v267, 0
        %v1672 = vsel %vm392, %v268, 0
        %v1675 = vsel %vm392, %v269, 0
        %v1678 = vsel %vm392, %v270, 0
        %v1681 = vsel %vm392, %v271, 0
        %v1684 = vsel %vm392, %v272, 0
        %v1687 = vsel %vm392, %v273, 0
        %v1690 = vsel %vm392, %v274, 0
        %v1693 = vsel %vm392, %v275, 0
        %v1696 = vsel %vm392, %v276, 0
        %v1699 = vsel %vm392, %v277, 0
        %v1702 = vsel %vm392, %v278, 0
        %v1705 = vsel %vm392, %v279, 0
        %v1708 = vsel %vm392, %v280, 0
        %v1711 = vsel %vm392, %v281, 0
        %v1714 = vsel %vm392, %v282, 0
        %v1717 = vsel %vm392, %v283, 0
        %v1720 = vsel %vm392, %v284, 0
        %v1723 = vsel %vm392, %v285, 0
        %v1726 = vsel %vm392, %v286, 0
        %v1729 = vsel %vm392, %v287, 0
        %v1732 = vsel %vm392, %v288, 0
        %v1735 = vsel %vm392, %v289, 0
        %v1738 = vsel %vm392, %v290, 0
        %v1741 = vsel %vm392, %v291, 0
        %v1744 = vsel %vm392, %v292, 0
        %v1747 = vsel %vm392, %v293, 0
        %v1750 = vsel %vm392, %v294, 0
        %v1753 = vsel %vm392, %v295, 0
        %v1756 = vsel %vm392, %v296, 0
        %v1759 = vsel %vm392, %v297, 0
        %v1762 = vsel %vm392, %v298, 0
        %v1765 = vsel %vm392, %v299, 0
        %v1768 = vsel %vm392, %v300, 0
        %v1771 = vsel %vm392, %v301, 0
        %v1774 = vsel %vm392, %v302, 0
        %v1777 = vsel %vm392, %v303, 0
        %v1780 = vsel %vm392, %v304, 0
        %v1783 = vsel %vm392, %v305, 0
        %v1786 = vsel %vm392, %v306, 0
        %v1789 = vsel %vm392, %v307, 0
        %v1792 = vsel %vm392, %v308, 0
        %v1795 = vsel %vm392, %v309, 0
        %v1798 = vsel %vm392, %v310, 0
        %v1801 = vsel %vm392, %v311, 0
        %v1804 = vsel %vm392, %v312, 0
        %v1807 = vsel %vm392, %v313, 0
        %v1810 = vsel %vm392, %v314, 0
        %v1813 = vsel %vm392, %v315, 0
        %v1816 = vsel %vm392, %v316, 0
        %1818 = vmatprep.subr.mxu0 0.0
        %1819 = vmatpush1.msra.mxu0 %v1622
        %1820 = vmatprep.subr.mxu0 0.0
        %1821 = vmatpush1.msra.mxu0 %v1623
        %1822 = vmatprep.subr.mxu0 0.0
        %1823 = vmatpush1.msra.mxu0 %v1624
        %1824 = vmatprep.subr.mxu0 0.0
        %1825 = vmatpush1.msra.mxu0 %v1625
        %1826 = vmatprep.subr.mxu0 0.0
        %1827 = vmatpush1.msra.mxu0 0.0
        %1828 = vmatprep.subr.mxu0 0.0
        %1829 = vmatpush1.msra.mxu0 0.0
        %1830 = vmatprep.subr.mxu0 0.0
        %1831 = vmatpush1.msra.mxu0 0.0
        %1832 = vmatprep.subr.mxu0 0.0
        %1833 = vmatpush1.msra.mxu0 0.0
        %1834 = vmatprep.subr.mxu0 0.0
        %1835 = vmatpush1.msra.mxu0 0.0
        %1836 = vmatprep.subr.mxu0 0.0
        %1837 = vmatpush1.msra.mxu0 0.0
        %1838 = vmatprep.subr.mxu0 0.0
        %1839 = vmatpush1.msra.mxu0 0.0
        %1840 = vmatprep.subr.mxu0 0.0
        %1841 = vmatpush1.msra.mxu0 0.0
        %1842 = vmatprep.subr.mxu0 0.0
        %1843 = vmatpush1.msra.mxu0 0.0
        %1844 = vmatprep.subr.mxu0 0.0
        %1845 = vmatpush1.msra.mxu0 0.0
        %1846 = vmatprep.subr.mxu0 0.0
        %1847 = vmatpush1.msra.mxu0 0.0
        %1848 = vmatprep.subr.mxu0 0.0
        %1849 = vmatpush1.msra.mxu0 0.0
        %1850 = vmatprep.subr.mxu0 0.0
        %1851 = vmatpush1.msra.mxu0 0.0
        %1852 = vmatprep.subr.mxu0 0.0
        %1853 = vmatpush1.msra.mxu0 0.0
        %1854 = vmatprep.subr.mxu0 0.0
        %1855 = vmatpush1.msra.mxu0 0.0
        %1856 = vmatprep.subr.mxu0 0.0
        %1857 = vmatpush1.msra.mxu0 0.0
        %1858 = vmatprep.subr.mxu0 0.0
        %1859 = vmatpush1.msra.mxu0 0.0
        %1860 = vmatprep.subr.mxu0 0.0
        %1861 = vmatpush1.msra.mxu0 0.0
        %1862 = vmatprep.subr.mxu0 0.0
        %1863 = vmatpush1.msra.mxu0 0.0
        %1864 = vmatprep.subr.mxu0 0.0
        %1865 = vmatpush1.msra.mxu0 0.0
        %1866 = vmatprep.subr.mxu0 0.0
        %1867 = vmatpush1.msra.mxu0 0.0
        %1868 = vmatprep.subr.mxu0 0.0
        %1869 = vmatpush1.msra.mxu0 0.0
        %1870 = vmatprep.subr.mxu0 0.0
        %1871 = vmatpush1.msra.mxu0 0.0
        %1872 = vmatprep.subr.mxu0 0.0
        %1873 = vmatpush1.msra.mxu0 0.0
        %1874 = vmatprep.subr.mxu0 0.0
        %1875 = vmatpush1.msra.mxu0 0.0
        %1876 = vmatprep.subr.mxu0 0.0
        %1877 = vmatpush1.msra.mxu0 0.0
        %1878 = vmatprep.subr.mxu0 0.0
        %1879 = vmatpush1.msra.mxu0 0.0
        %1880 = vmatprep.subr.mxu0 0.0
        %1881 = vmatpush1.msra.mxu0 0.0
        %1882 = vmatprep.mubr.f32.mxu0 0.0
        %1883 = vmatmul.mubr.f32.gmra.mrb[0].mxu0 %v1627
        %v1884 = vpop.f32.mrb[0].mxu0
        %v1885 = vadd.f32 %v1304, %v1884
        %v1886 = vpop.f32.mrb[0].mxu0
        %1887 = vmatprep.mubr.f32.mxu0 0.0
        %1888 = vmatmul.mubr.f32.gmra.mrb[0].mxu0 %v1630
        %v1889 = vpop.f32.mrb[0].mxu0
        %v1890 = vadd.f32 %v1309, %v1889
        %v1891 = vpop.f32.mrb[0].mxu0
        %1892 = vmatprep.mubr.f32.mxu0 0.0
        %1893 = vmatmul.mubr.f32.gmra.mrb[0].mxu0 %v1633
        %v1894 = vpop.f32.mrb[0].mxu0
        %v1895 = vadd.f32 %v1314, %v1894
        %v1896 = vpop.f32.mrb[0].mxu0
        %1897 = vmatprep.mubr.f32.mxu0 0.0
        %1898 = vmatmul.mubr.f32.gmra.mrb[0].mxu0 %v1636
        %v1899 = vpop.f32.mrb[0].mxu0
        %v1900 = vadd.f32 %v1319, %v1899
        %v1901 = vpop.f32.mrb[0].mxu0
        %1902 = vmatprep.mubr.f32.mxu0 0.0
        %1903 = vmatmul.mubr.f32.gmra.mrb[0].mxu0 %v1639
        %v1904 = vpop.f32.mrb[0].mxu0
        %v1905 = vadd.f32 %v1324, %v1904
        %v1906 = vpop.f32.mrb[0].mxu0
        %1907 = vmatprep.mubr.f32.mxu0 0.0
        %1908 = vmatmul.mubr.f32.gmra.mrb[0].mxu0 %v1642
        %v1909 = vpop.f32.mrb[0].mxu0
        %v1910 = vadd.f32 %v1329, %v1909
        %v1911 = vpop.f32.mrb[0].mxu0
        %1912 = vmatprep.mubr.f32.mxu0 0.0
        %1913 = vmatmul.mubr.f32.gmra.mrb[0].mxu0 %v1645
        %v1914 = vpop.f32.mrb[0].mxu0
        %v1915 = vadd.f32 %v1334, %v1914
        %v1916 = vpop.f32.mrb[0].mxu0
        %1917 = vmatprep.mubr.f32.mxu0 0.0
        %1918 = vmatmul.mubr.f32.gmra.mrb[0].mxu0 %v1648
        %v1919 = vpop.f32.mrb[0].mxu0
        %v1920 = vadd.f32 %v1339, %v1919
        %v1921 = vpop.f32.mrb[0].mxu0
        %1922 = vmatprep.mubr.f32.mxu0 0.0
        %1923 = vmatmul.mubr.f32.gmra.mrb[0].mxu0 %v1651
        %v1924 = vpop.f32.mrb[0].mxu0
        %v1925 = vadd.f32 %v1344, %v1924
        %v1926 = vpop.f32.mrb[0].mxu0
        %1927 = vmatprep.mubr.f32.mxu0 0.0
        %1928 = vmatmul.mubr.f32.gmra.mrb[0].mxu0 %v1654
        %v1929 = vpop.f32.mrb[0].mxu0
        %v1930 = vadd.f32 %v1349, %v1929
        %v1931 = vpop.f32.mrb[0].mxu0
        %1932 = vmatprep.mubr.f32.mxu0 0.0
        %1933 = vmatmul.mubr.f32.gmra.mrb[0].mxu0 %v1657
        %v1934 = vpop.f32.mrb[0].mxu0
        %v1935 = vadd.f32 %v1354, %v1934
        %v1936 = vpop.f32.mrb[0].mxu0
        %1937 = vmatprep.mubr.f32.mxu0 0.0
        %1938 = vmatmul.mubr.f32.gmra.mrb[0].mxu0 %v1660
        %v1939 = vpop.f32.mrb[0].mxu0
        %v1940 = vadd.f32 %v1359, %v1939
        %v1941 = vpop.f32.mrb[0].mxu0
        %1942 = vmatprep.mubr.f32.mxu0 0.0
        %1943 = vmatmul.mubr.f32.gmra.mrb[0].mxu0 %v1663
        %v1944 = vpop.f32.mrb[0].mxu0
        %v1945 = vadd.f32 %v1364, %v1944
        %v1946 = vpop.f32.mrb[0].mxu0
        %1947 = vmatprep.mubr.f32.mxu0 0.0
        %1948 = vmatmul.mubr.f32.gmra.mrb[0].mxu0 %v1666
        %v1949 = vpop.f32.mrb[0].mxu0
        %v1950 = vadd.f32 %v1369, %v1949
        %v1951 = vpop.f32.mrb[0].mxu0
        %1952 = vmatprep.mubr.f32.mxu0 0.0
        %1953 = vmatmul.mubr.f32.gmra.mrb[0].mxu0 %v1669
        %v1954 = vpop.f32.mrb[0].mxu0
        %v1955 = vadd.f32 %v1374, %v1954
        %v1956 = vpop.f32.mrb[0].mxu0
        %1957 = vmatprep.mubr.f32.mxu0 0.0
        %1958 = vmatmul.mubr.f32.gmra.mrb[0].mxu0 %v1672
        %v1959 = vpop.f32.mrb[0].mxu0
        %v1960 = vadd.f32 %v1379, %v1959
        %v1961 = vpop.f32.mrb[0].mxu0
        %1962 = vmatprep.mubr.f32.mxu0 0.0
        %1963 = vmatmul.mubr.f32.gmra.mrb[0].mxu0 %v1675
        %v1964 = vpop.f32.mrb[0].mxu0
        %v1965 = vadd.f32 %v1384, %v1964
        %v1966 = vpop.f32.mrb[0].mxu0
        %1967 = vmatprep.mubr.f32.mxu0 0.0
        %1968 = vmatmul.mubr.f32.gmra.mrb[0].mxu0 %v1678
        %v1969 = vpop.f32.mrb[0].mxu0
        %v1970 = vadd.f32 %v1389, %v1969
        %v1971 = vpop.f32.mrb[0].mxu0
        %1972 = vmatprep.mubr.f32.mxu0 0.0
        %1973 = vmatmul.mubr.f32.gmra.mrb[0].mxu0 %v1681
        %v1974 = vpop.f32.mrb[0].mxu0
        %v1975 = vadd.f32 %v1394, %v1974
        %v1976 = vpop.f32.mrb[0].mxu0
        %1977 = vmatprep.mubr.f32.mxu0 0.0
        %1978 = vmatmul.mubr.f32.gmra.mrb[0].mxu0 %v1684
        %v1979 = vpop.f32.mrb[0].mxu0
        %v1980 = vadd.f32 %v1399, %v1979
        %v1981 = vpop.f32.mrb[0].mxu0
        %1982 = vmatprep.mubr.f32.mxu0 0.0
        %1983 = vmatmul.mubr.f32.gmra.mrb[0].mxu0 %v1687
        %v1984 = vpop.f32.mrb[0].mxu0
        %v1985 = vadd.f32 %v1404, %v1984
        %v1986 = vpop.f32.mrb[0].mxu0
        %1987 = vmatprep.mubr.f32.mxu0 0.0
        %1988 = vmatmul.mubr.f32.gmra.mrb[0].mxu0 %v1690
        %v1989 = vpop.f32.mrb[0].mxu0
        %v1990 = vadd.f32 %v1409, %v1989
        %v1991 = vpop.f32.mrb[0].mxu0
        %1992 = vmatprep.mubr.f32.mxu0 0.0
        %1993 = vmatmul.mubr.f32.gmra.mrb[0].mxu0 %v1693
        %v1994 = vpop.f32.mrb[0].mxu0
        %v1995 = vadd.f32 %v1414, %v1994
        %v1996 = vpop.f32.mrb[0].mxu0
        %1997 = vmatprep.mubr.f32.mxu0 0.0
        %1998 = vmatmul.mubr.f32.gmra.mrb[0].mxu0 %v1696
        %v1999 = vpop.f32.mrb[0].mxu0
        %v2000 = vadd.f32 %v1419, %v1999
        %v2001 = vpop.f32.mrb[0].mxu0
        %2002 = vmatprep.mubr.f32.mxu0 0.0
        %2003 = vmatmul.mubr.f32.gmra.mrb[0].mxu0 %v1699
        %v2004 = vpop.f32.mrb[0].mxu0
        %v2005 = vadd.f32 %v1424, %v2004
        %v2006 = vpop.f32.mrb[0].mxu0
        %2007 = vmatprep.mubr.f32.mxu0 0.0
        %2008 = vmatmul.mubr.f32.gmra.mrb[0].mxu0 %v1702
        %v2009 = vpop.f32.mrb[0].mxu0
        %v2010 = vadd.f32 %v1429, %v2009
        %v2011 = vpop.f32.mrb[0].mxu0
        %2012 = vmatprep.mubr.f32.mxu0 0.0
        %2013 = vmatmul.mubr.f32.gmra.mrb[0].mxu0 %v1705
        %v2014 = vpop.f32.mrb[0].mxu0
        %v2015 = vadd.f32 %v1434, %v2014
        %v2016 = vpop.f32.mrb[0].mxu0
        %2017 = vmatprep.mubr.f32.mxu0 0.0
        %2018 = vmatmul.mubr.f32.gmra.mrb[0].mxu0 %v1708
        %v2019 = vpop.f32.mrb[0].mxu0
        %v2020 = vadd.f32 %v1439, %v2019
        %v2021 = vpop.f32.mrb[0].mxu0
        %2022 = vmatprep.mubr.f32.mxu0 0.0
        %2023 = vmatmul.mubr.f32.gmra.mrb[0].mxu0 %v1711
        %v2024 = vpop.f32.mrb[0].mxu0
        %v2025 = vadd.f32 %v1444, %v2024
        %v2026 = vpop.f32.mrb[0].mxu0
        %2027 = vmatprep.mubr.f32.mxu0 0.0
        %2028 = vmatmul.mubr.f32.gmra.mrb[0].mxu0 %v1714
        %v2029 = vpop.f32.mrb[0].mxu0
        %v2030 = vadd.f32 %v1449, %v2029
        %v2031 = vpop.f32.mrb[0].mxu0
        %2032 = vmatprep.mubr.f32.mxu0 0.0
        %2033 = vmatmul.mubr.f32.gmra.mrb[0].mxu0 %v1717
        %v2034 = vpop.f32.mrb[0].mxu0
        %v2035 = vadd.f32 %v1454, %v2034
        %v2036 = vpop.f32.mrb[0].mxu0
        %2037 = vmatprep.mubr.f32.mxu0 0.0
        %2038 = vmatmul.mubr.f32.gmra.mrb[0].mxu0 %v1720
        %v2039 = vpop.f32.mrb[0].mxu0
        %v2040 = vadd.f32 %v1459, %v2039
        %v2041 = vpop.f32.mrb[0].mxu0
        %2042 = vmatprep.mubr.f32.mxu0 0.0
        %2043 = vmatmul.mubr.f32.gmra.mrb[0].mxu0 %v1723
        %v2044 = vpop.f32.mrb[0].mxu0
        %v2045 = vadd.f32 %v1464, %v2044
        %v2046 = vpop.f32.mrb[0].mxu0
        %2047 = vmatprep.mubr.f32.mxu0 0.0
        %2048 = vmatmul.mubr.f32.gmra.mrb[0].mxu0 %v1726
        %v2049 = vpop.f32.mrb[0].mxu0
        %v2050 = vadd.f32 %v1469, %v2049
        %v2051 = vpop.f32.mrb[0].mxu0
        %2052 = vmatprep.mubr.f32.mxu0 0.0
        %2053 = vmatmul.mubr.f32.gmra.mrb[0].mxu0 %v1729
        %v2054 = vpop.f32.mrb[0].mxu0
        %v2055 = vadd.f32 %v1474, %v2054
        %v2056 = vpop.f32.mrb[0].mxu0
        %2057 = vmatprep.mubr.f32.mxu0 0.0
        %2058 = vmatmul.mubr.f32.gmra.mrb[0].mxu0 %v1732
        %v2059 = vpop.f32.mrb[0].mxu0
        %v2060 = vadd.f32 %v1479, %v2059
        %v2061 = vpop.f32.mrb[0].mxu0
        %2062 = vmatprep.mubr.f32.mxu0 0.0
        %2063 = vmatmul.mubr.f32.gmra.mrb[0].mxu0 %v1735
        %v2064 = vpop.f32.mrb[0].mxu0
        %v2065 = vadd.f32 %v1484, %v2064
        %v2066 = vpop.f32.mrb[0].mxu0
        %2067 = vmatprep.mubr.f32.mxu0 0.0
        %2068 = vmatmul.mubr.f32.gmra.mrb[0].mxu0 %v1738
        %v2069 = vpop.f32.mrb[0].mxu0
        %v2070 = vadd.f32 %v1489, %v2069
        %v2071 = vpop.f32.mrb[0].mxu0
        %2072 = vmatprep.mubr.f32.mxu0 0.0
        %2073 = vmatmul.mubr.f32.gmra.mrb[0].mxu0 %v1741
        %v2074 = vpop.f32.mrb[0].mxu0
        %v2075 = vadd.f32 %v1494, %v2074
        %v2076 = vpop.f32.mrb[0].mxu0
        %2077 = vmatprep.mubr.f32.mxu0 0.0
        %2078 = vmatmul.mubr.f32.gmra.mrb[0].mxu0 %v1744
        %v2079 = vpop.f32.mrb[0].mxu0
        %v2080 = vadd.f32 %v1499, %v2079
        %v2081 = vpop.f32.mrb[0].mxu0
        %2082 = vmatprep.mubr.f32.mxu0 0.0
        %2083 = vmatmul.mubr.f32.gmra.mrb[0].mxu0 %v1747
        %v2084 = vpop.f32.mrb[0].mxu0
        %v2085 = vadd.f32 %v1504, %v2084
        %v2086 = vpop.f32.mrb[0].mxu0
        %2087 = vmatprep.mubr.f32.mxu0 0.0
        %2088 = vmatmul.mubr.f32.gmra.mrb[0].mxu0 %v1750
        %v2089 = vpop.f32.mrb[0].mxu0
        %v2090 = vadd.f32 %v1509, %v2089
        %v2091 = vpop.f32.mrb[0].mxu0
        %2092 = vmatprep.mubr.f32.mxu0 0.0
        %2093 = vmatmul.mubr.f32.gmra.mrb[0].mxu0 %v1753
        %v2094 = vpop.f32.mrb[0].mxu0
        %v2095 = vadd.f32 %v1514, %v2094
        %v2096 = vpop.f32.mrb[0].mxu0
        %2097 = vmatprep.mubr.f32.mxu0 0.0
        %2098 = vmatmul.mubr.f32.gmra.mrb[0].mxu0 %v1756
        %v2099 = vpop.f32.mrb[0].mxu0
        %v2100 = vadd.f32 %v1519, %v2099
        %v2101 = vpop.f32.mrb[0].mxu0
        %2102 = vmatprep.mubr.f32.mxu0 0.0
        %2103 = vmatmul.mubr.f32.gmra.mrb[0].mxu0 %v1759
        %v2104 = vpop.f32.mrb[0].mxu0
        %v2105 = vadd.f32 %v1524, %v2104
        %v2106 = vpop.f32.mrb[0].mxu0
        %2107 = vmatprep.mubr.f32.mxu0 0.0
        %2108 = vmatmul.mubr.f32.gmra.mrb[0].mxu0 %v1762
        %v2109 = vpop.f32.mrb[0].mxu0
        %v2110 = vadd.f32 %v1529, %v2109
        %v2111 = vpop.f32.mrb[0].mxu0
        %2112 = vmatprep.mubr.f32.mxu0 0.0
        %2113 = vmatmul.mubr.f32.gmra.mrb[0].mxu0 %v1765
        %v2114 = vpop.f32.mrb[0].mxu0
        %v2115 = vadd.f32 %v1534, %v2114
        %v2116 = vpop.f32.mrb[0].mxu0
        %2117 = vmatprep.mubr.f32.mxu0 0.0
        %2118 = vmatmul.mubr.f32.gmra.mrb[0].mxu0 %v1768
        %v2119 = vpop.f32.mrb[0].mxu0
        %v2120 = vadd.f32 %v1539, %v2119
        %v2121 = vpop.f32.mrb[0].mxu0
        %2122 = vmatprep.mubr.f32.mxu0 0.0
        %2123 = vmatmul.mubr.f32.gmra.mrb[0].mxu0 %v1771
        %v2124 = vpop.f32.mrb[0].mxu0
        %v2125 = vadd.f32 %v1544, %v2124
        %v2126 = vpop.f32.mrb[0].mxu0
        %2127 = vmatprep.mubr.f32.mxu0 0.0
        %2128 = vmatmul.mubr.f32.gmra.mrb[0].mxu0 %v1774
        %v2129 = vpop.f32.mrb[0].mxu0
        %v2130 = vadd.f32 %v1549, %v2129
        %v2131 = vpop.f32.mrb[0].mxu0
        %2132 = vmatprep.mubr.f32.mxu0 0.0
        %2133 = vmatmul.mubr.f32.gmra.mrb[0].mxu0 %v1777
        %v2134 = vpop.f32.mrb[0].mxu0
        %v2135 = vadd.f32 %v1554, %v2134
        %v2136 = vpop.f32.mrb[0].mxu0
        %2137 = vmatprep.mubr.f32.mxu0 0.0
        %2138 = vmatmul.mubr.f32.gmra.mrb[0].mxu0 %v1780
        %v2139 = vpop.f32.mrb[0].mxu0
        %v2140 = vadd.f32 %v1559, %v2139
        %v2141 = vpop.f32.mrb[0].mxu0
        %2142 = vmatprep.mubr.f32.mxu0 0.0
        %2143 = vmatmul.mubr.f32.gmra.mrb[0].mxu0 %v1783
        %v2144 = vpop.f32.mrb[0].mxu0
        %v2145 = vadd.f32 %v1564, %v2144
        %v2146 = vpop.f32.mrb[0].mxu0
        %2147 = vmatprep.mubr.f32.mxu0 0.0
        %2148 = vmatmul.mubr.f32.gmra.mrb[0].mxu0 %v1786
        %v2149 = vpop.f32.mrb[0].mxu0
        %v2150 = vadd.f32 %v1569, %v2149
        %v2151 = vpop.f32.mrb[0].mxu0
        %2152 = vmatprep.mubr.f32.mxu0 0.0
        %2153 = vmatmul.mubr.f32.gmra.mrb[0].mxu0 %v1789
        %v2154 = vpop.f32.mrb[0].mxu0
        %v2155 = vadd.f32 %v1574, %v2154
        %v2156 = vpop.f32.mrb[0].mxu0
        %2157 = vmatprep.mubr.f32.mxu0 0.0
        %2158 = vmatmul.mubr.f32.gmra.mrb[0].mxu0 %v1792
        %v2159 = vpop.f32.mrb[0].mxu0
        %v2160 = vadd.f32 %v1579, %v2159
        %v2161 = vpop.f32.mrb[0].mxu0
        %2162 = vmatprep.mubr.f32.mxu0 0.0
        %2163 = vmatmul.mubr.f32.gmra.mrb[0].mxu0 %v1795
        %v2164 = vpop.f32.mrb[0].mxu0
        %v2165 = vadd.f32 %v1584, %v2164
        %v2166 = vpop.f32.mrb[0].mxu0
        %2167 = vmatprep.mubr.f32.mxu0 0.0
        %2168 = vmatmul.mubr.f32.gmra.mrb[0].mxu0 %v1798
        %v2169 = vpop.f32.mrb[0].mxu0
        %v2170 = vadd.f32 %v1589, %v2169
        %v2171 = vpop.f32.mrb[0].mxu0
        %2172 = vmatprep.mubr.f32.mxu0 0.0
        %2173 = vmatmul.mubr.f32.gmra.mrb[0].mxu0 %v1801
        %v2174 = vpop.f32.mrb[0].mxu0
        %v2175 = vadd.f32 %v1594, %v2174
        %v2176 = vpop.f32.mrb[0].mxu0
        %2177 = vmatprep.mubr.f32.mxu0 0.0
        %2178 = vmatmul.mubr.f32.gmra.mrb[0].mxu0 %v1804
        %v2179 = vpop.f32.mrb[0].mxu0
        %v2180 = vadd.f32 %v1599, %v2179
        %v2181 = vpop.f32.mrb[0].mxu0
        %2182 = vmatprep.mubr.f32.mxu0 0.0
        %2183 = vmatmul.mubr.f32.gmra.mrb[0].mxu0 %v1807
        %v2184 = vpop.f32.mrb[0].mxu0
        %v2185 = vadd.f32 %v1604, %v2184
        %v2186 = vpop.f32.mrb[0].mxu0
        %2187 = vmatprep.mubr.f32.mxu0 0.0
        %2188 = vmatmul.mubr.f32.gmra.mrb[0].mxu0 %v1810
        %v2189 = vpop.f32.mrb[0].mxu0
        %v2190 = vadd.f32 %v1609, %v2189
        %v2191 = vpop.f32.mrb[0].mxu0
        %2192 = vmatprep.mubr.f32.mxu0 0.0
        %2193 = vmatmul.mubr.f32.gmra.mrb[0].mxu0 %v1813
        %v2194 = vpop.f32.mrb[0].mxu0
        %v2195 = vadd.f32 %v1614, %v2194
        %v2196 = vpop.f32.mrb[0].mxu0
        %2197 = vmatprep.mubr.f32.mxu0 0.0
        %2198 = vmatmul.mubr.f32.gmra.mrb[0].mxu0 %v1816
        %v2199 = vpop.f32.mrb[0].mxu0
        %v2200 = vadd.f32 %v1619, %v2199
        %v2201 = vpop.f32.mrb[0].mxu0
        %2202 = vdwg.mxu0
        %2203 = vst [vmem:[%s245] sm:$0xff] %v1885
        %2204 = vst [vmem:[%s245 + $0x8] sm:$0xff] %v1890
        %2205 = vst [vmem:[%s245 + $0x10] sm:$0xff] %v1895
        %2206 = vst [vmem:[%s245 + $0x18] sm:$0xff] %v1900
        %2207 = vst [vmem:[%s245 + $0x20] sm:$0xff] %v1905
        %2208 = vst [vmem:[%s245 + $0x28] sm:$0xff] %v1910
        %2209 = vst [vmem:[%s245 + $0x30] sm:$0xff] %v1915
        %2210 = vst [vmem:[%s245 + $0x38] sm:$0xff] %v1920
        %2211 = vst [vmem:[%s245 + $0x40] sm:$0xff] %v1925
        %2212 = vst [vmem:[%s245 + $0x48] sm:$0xff] %v1930
        %2213 = vst [vmem:[%s245 + $0x50] sm:$0xff] %v1935
        %2214 = vst [vmem:[%s245 + $0x58] sm:$0xff] %v1940
        %2215 = vst [vmem:[%s245 + $0x60] sm:$0xff] %v1945
        %2216 = vst [vmem:[%s245 + $0x68] sm:$0xff] %v1950
        %2217 = vst [vmem:[%s245 + $0x70] sm:$0xff] %v1955
        %2218 = vst [vmem:[%s245 + $0x78] sm:$0xff] %v1960
        %2219 = vst [vmem:[%s245 + $0x80] sm:$0xff] %v1965
        %2220 = vst [vmem:[%s245 + $0x88] sm:$0xff] %v1970
        %2221 = vst [vmem:[%s245 + $0x90] sm:$0xff] %v1975
        %2222 = vst [vmem:[%s245 + $0x98] sm:$0xff] %v1980
        %2223 = vst [vmem:[%s245 + $0xa0] sm:$0xff] %v1985
        %2224 = vst [vmem:[%s245 + $0xa8] sm:$0xff] %v1990
        %2225 = vst [vmem:[%s245 + $0xb0] sm:$0xff] %v1995
        %2226 = vst [vmem:[%s245 + $0xb8] sm:$0xff] %v2000
        %2227 = vst [vmem:[%s245 + $0xc0] sm:$0xff] %v2005
        %2228 = vst [vmem:[%s245 + $0xc8] sm:$0xff] %v2010
        %2229 = vst [vmem:[%s245 + $0xd0] sm:$0xff] %v2015
        %2230 = vst [vmem:[%s245 + $0xd8] sm:$0xff] %v2020
        %2231 = vst [vmem:[%s245 + $0xe0] sm:$0xff] %v2025
        %2232 = vst [vmem:[%s245 + $0xe8] sm:$0xff] %v2030
        %2233 = vst [vmem:[%s245 + $0xf0] sm:$0xff] %v2035
        %2234 = vst [vmem:[%s245 + $0xf8] sm:$0xff] %v2040
        %2235 = vst [vmem:[%s245 + $0x100] sm:$0xff] %v2045
        %2236 = vst [vmem:[%s245 + $0x108] sm:$0xff] %v2050
        %2237 = vst [vmem:[%s245 + $0x110] sm:$0xff] %v2055
        %2238 = vst [vmem:[%s245 + $0x118] sm:$0xff] %v2060
        %2239 = vst [vmem:[%s245 + $0x120] sm:$0xff] %v2065
        %2240 = vst [vmem:[%s245 + $0x128] sm:$0xff] %v2070
        %2241 = vst [vmem:[%s245 + $0x130] sm:$0xff] %v2075
        %2242 = vst [vmem:[%s245 + $0x138] sm:$0xff] %v2080
        %2243 = vst [vmem:[%s245 + $0x140] sm:$0xff] %v2085
        %2244 = vst [vmem:[%s245 + $0x148] sm:$0xff] %v2090
        %2245 = vst [vmem:[%s245 + $0x150] sm:$0xff] %v2095
        %2246 = vst [vmem:[%s245 + $0x158] sm:$0xff] %v2100
        %2247 = vst [vmem:[%s245 + $0x160] sm:$0xff] %v2105
        %2248 = vst [vmem:[%s245 + $0x168] sm:$0xff] %v2110
        %2249 = vst [vmem:[%s245 + $0x170] sm:$0xff] %v2115
        %2250 = vst [vmem:[%s245 + $0x178] sm:$0xff] %v2120
        %2251 = vst [vmem:[%s245 + $0x180] sm:$0xff] %v2125
        %2252 = vst [vmem:[%s245 + $0x188] sm:$0xff] %v2130
        %2253 = vst [vmem:[%s245 + $0x190] sm:$0xff] %v2135
        %2254 = vst [vmem:[%s245 + $0x198] sm:$0xff] %v2140
        %2255 = vst [vmem:[%s245 + $0x1a0] sm:$0xff] %v2145
        %2256 = vst [vmem:[%s245 + $0x1a8] sm:$0xff] %v2150
        %2257 = vst [vmem:[%s245 + $0x1b0] sm:$0xff] %v2155
        %2258 = vst [vmem:[%s245 + $0x1b8] sm:$0xff] %v2160
        %2259 = vst [vmem:[%s245 + $0x1c0] sm:$0xff] %v2165
        %2260 = vst [vmem:[%s245 + $0x1c8] sm:$0xff] %v2170
        %2261 = vst [vmem:[%s245 + $0x1d0] sm:$0xff] %v2175
        %2262 = vst [vmem:[%s245 + $0x1d8] sm:$0xff] %v2180
        %2263 = vst [vmem:[%s245 + $0x1e0] sm:$0xff] %v2185
        %2264 = vst [vmem:[%s245 + $0x1e8] sm:$0xff] %v2190
        %2265 = vst [vmem:[%s245 + $0x1f0] sm:$0xff] %v2195
        %2266 = vst [vmem:[%s245 + $0x1f8] sm:$0xff] %v2200
        %s2267 = sand.u32 %s159, 1
        %s2268 = scalar_lea.sflag [#allocation3], %s2267
        %s2269 = sand.u32 %s159, 1
        %s2270 = smul.addr %s2269, 512
        %s2271 = scalar_lea.vmem [#allocation2], %s2270
        // Predicated region
        $region45: #{tpu_custom_call.1} parent=43 // pred_check
          %p2272 = pneg %p169
        $region46: #{tpu_custom_call.1} parent=43 // pred_check_branch
          %2274 = sbr.rel (%p2272) target = $region48
        $region47: #{tpu_custom_call.1} parent=43 // pred_region
          %s2275 = smul.u32 64, %s20
          %s2277 = ssub.s32 8192, 8192
          %2278 = vsyncadd %s2268, %s2277
          %s2279 = smul.addr %s2275, 128
          %s2280 = scalar_lea.hbm %s6, %s2279
          %s2281 = sshll.u32 %s2271, 4
          %s2282 = int_to_ptr.vmem [resolvable:$true] %s2281
          %2287 = dma.vmem_to_hbm [thread:$0]  %s2282, 8192, %s2280, %s2268, 128, 128, 8
        $region48: #{tpu_custom_call.1} parent=43 // pred_fallthru
          _
      $region44: #{tpu_custom_call.1} parent=5 // pred_fallthru
        _
      %p2288 = scmp.le.s32.totalorder 2, %s15
      // Predicated region
      $region49: #{tpu_custom_call.1} parent=5 // pred_check
        %p2289 = pneg %p2288
      $region50: #{tpu_custom_call.1} parent=5 // pred_check_branch
        %2291 = sbr.rel (%p2289) target = $region52
      $region51: #{tpu_custom_call.1} parent=5 // pred_region
        %s2292 = ssub.s32 %s15, 2
        // Predicated region
        $region53: #{tpu_custom_call.1} parent=51 // pred_check
          %p2293 = pneg %p175
        $region54: #{tpu_custom_call.1} parent=51 // pred_check_branch
          %2295 = sbr.rel (%p2293) target = $region56
        $region55: #{tpu_custom_call.1} parent=51 // pred_region
          %s2296 = sand.u32 %s160, 1
          %s2297 = scalar_lea.sflag [#allocation3], %s2296
          %s2298 = sand.u32 %s160, 1
          %s2299 = smul.addr %s2298, 512
          %s2300 = scalar_lea.vmem [#allocation2], %s2299
          %2301 = dma.done %s2297, 8192
        $region56: #{tpu_custom_call.1} parent=51 // pred_fallthru
          _
      $region52: #{tpu_custom_call.1} parent=5 // pred_fallthru
        _
    $region6: #{tpu_custom_call.1} parent=1 // loop_footer
      %s19 = sadd.s32 1, %s15
    $region7: #{tpu_custom_call.1} parent=1 // loop_footer_branch
      %14 = sbr.rel target = $region3
    $region8: #{tpu_custom_call.1} parent=1 // loop_exit
      _
    %2302 = vsyncpa [#allocation3], 1
    %s2303 = scalar_lea.sflag [#allocation3], 1
    %2304 = vsyncpa %s2303, 1

</llo_original>
